<compile_context>
chip_gen: v7x
topology: tpu7x:2x2x1
jax: 0.10.0
libtpu: 0.0.40
codegen_flags: <defaults>
</compile_context>

<pallas_src>
import jax
import jax.numpy as jnp
from jax.experimental import pallas as pl
from jax.experimental.pallas import tpu as pltpu

MODE = "LSTM"  # this script instantiates the LSTM variant of the module


def _make_kernel(num_layers, seq_len, batch, hidden):
    L, T, B, H = num_layers, seq_len, batch, hidden

    def kernel(x_ref, *refs):
        # refs = [w_x0, w_h0, b0,
        #         w_cat_1, b_1, ..., w_cat_{L-1}, b_{L-1},
        #         fc_wf, fc_wb, fc_b, out_ref]
        out_ref = refs[-1]
        n_upper = 2 * (L - 1)
        fc_wf = refs[3 + n_upper + 0][...]   # (H, O)
        fc_wb = refs[3 + n_upper + 1][...]   # (H, O)
        fc_b = refs[3 + n_upper + 2][...]    # (1, O)

        w_x0 = refs[0][...]                  # (I, 4H)
        w_h0 = refs[1][...]                  # (H, 4H)
        b0 = refs[2][...]                    # (1, 4H)

        upper = []                           # layers 1 .. L-1
        for l in range(1, L):
            w_cat = refs[3 + 2 * (l - 1) + 0][...]                     # (2H, 4H)
            b = jnp.broadcast_to(refs[3 + 2 * (l - 1) + 1][...],
                                 (B, 4 * H))                           # hoisted
            upper.append((w_cat, b))

        def gates_to_hc(gates, c):
            """gates: (B, 4H) = [i | f | g | o] pre-activation."""
            sg = jax.nn.sigmoid(gates)                 # i, f, o (full width)
            g = jnp.tanh(gates[:, 2 * H:3 * H])        # candidate only
            i = sg[:, 0 * H:1 * H]
            f = sg[:, 1 * H:2 * H]
            o = sg[:, 3 * H:4 * H]
            c_new = f * c + i * g
            h_new = o * jnp.tanh(c_new)
            return h_new, c_new

        def gates_to_h_zero_state(gates):
            """LSTM cell with h == c == 0: f*c term and h2h matmul dropped."""
            sg = jax.nn.sigmoid(gates)
            g = jnp.tanh(gates[:, 2 * H:3 * H])
            c_new = sg[:, 0 * H:1 * H] * g
            return sg[:, 3 * H:4 * H] * jnp.tanh(c_new)

        # Layer-0 x-projection for all timesteps in a single MXU pass.
        pre0 = (jnp.dot(x_ref[...], w_x0, preferred_element_type=jnp.float32)
                + jnp.broadcast_to(b0, (T * B, 4 * H)))                # (T*B, 4H)

        # ---- Backward direction (dead beyond t == 0) ---------------------
        # outs_rev[0] = one pass of input[:, -1, :] through all layers from
        # zero state; all backward work for t >= 1 never reaches the output.
        h_b = gates_to_h_zero_state(pre0[(T - 1) * B:T * B, :])
        for l in range(1, L):
            w_cat, b = upper[l - 1]
            g = jnp.dot(h_b, w_cat[:H, :],
                        preferred_element_type=jnp.float32) + b
            h_b = gates_to_h_zero_state(g)
        out_rev = h_b

        # ---- Forward direction: fully unrolled time loop -----------------
        zeros = jnp.zeros((B, H), jnp.float32)
        hf = [zeros] * L
        cf = [zeros] * L
        for t in range(T):                                # static indices
            g0 = (pre0[t * B:(t + 1) * B, :]
                  + jnp.dot(hf[0], w_h0, preferred_element_type=jnp.float32))
            hf[0], cf[0] = gates_to_hc(g0, cf[0])
            inp = hf[0]
            for l in range(1, L):
                w_cat, b = upper[l - 1]
                xh = jnp.concatenate([inp, hf[l]], axis=1)            # (B, 2H)
                g = jnp.dot(xh, w_cat,
                            preferred_element_type=jnp.float32) + b
                hf[l], cf[l] = gates_to_hc(g, cf[l])
                inp = hf[l]
        out_fwd = hf[L - 1]                               # outs[-1]

        # ---- Final Linear without a lane concat ---------------------------
        out_ref[...] = (
            jnp.dot(out_fwd, fc_wf, preferred_element_type=jnp.float32)
            + jnp.dot(out_rev, fc_wb, preferred_element_type=jnp.float32)
            + fc_b)

    return kernel


def bidir_recurrent_forward(x, layer_params, fc_w, fc_b, *, hidden_size,
                            num_layers):
    """x: (B, T, I) batch-first (PyTorch convention).

    layer_params[l] = (w_ih (4H, in), w_hh (4H, H), b_ih (4H,), b_hh (4H,))
    fc_w: (O, 2H), fc_b: (O,)
    """
    B, T, I = x.shape
    H, L = hidden_size, num_layers
    O = fc_w.shape[0]

    # Time-major, flattened to (T*B, I): layout plumbing only.
    x_flat = jnp.transpose(x, (1, 0, 2)).astype(jnp.float32).reshape(T * B, I)

    inputs = [x_flat]
    # Layer 0: x2h / h2h kept separate so the x projection can be batched.
    w_ih0, w_hh0, b_ih0, b_hh0 = layer_params[0]
    inputs += [w_ih0.T.astype(jnp.float32),                       # (I, 4H)
               w_hh0.T.astype(jnp.float32),                       # (H, 4H)
               (b_ih0 + b_hh0).astype(jnp.float32).reshape(1, -1)]
    # Layers 1..L-1: fused [x2h; h2h] weight, pre-summed bias.
    for l in range(1, L):
        w_ih, w_hh, b_ih, b_hh = layer_params[l]
        w_cat = jnp.concatenate([w_ih.T, w_hh.T],
                                axis=0).astype(jnp.float32)       # (2H, 4H)
        inputs += [w_cat, (b_ih + b_hh).astype(jnp.float32).reshape(1, -1)]

    fc_wT = fc_w.T.astype(jnp.float32)                            # (2H, O)
    inputs += [fc_wT[:H, :], fc_wT[H:, :],
               fc_b.astype(jnp.float32).reshape(1, -1)]

    kernel = _make_kernel(L, T, B, H)
    vmem = pl.BlockSpec(memory_space=pltpu.MemorySpace.VMEM)
    return pl.pallas_call(
        kernel,
        out_shape=jax.ShapeDtypeStruct((B, O), jnp.float32),
        in_specs=[vmem] * len(inputs),
        out_specs=vmem,
    )(*inputs)


def _reference(x, layer_params, fc_w, fc_b, *, hidden_size, num_layers):
    """Pure-JAX transcription of the PyTorch forward (for verification)."""
    B, T, _ = x.shape
    H, L = hidden_size, num_layers
    hf = [(jnp.zeros((B, H)), jnp.zeros((B, H))) for _ in range(L)]
    hb = [(jnp.zeros((B, H)), jnp.zeros((B, H))) for _ in range(L)]
    outs, outs_rev = [], []

    def cell(xin, hc, p):
        w_ih, w_hh, b_ih, b_hh = p
        h, c = hc
        gates = xin @ w_ih.T + b_ih + h @ w_hh.T + b_hh
        i, f, g, o = jnp.split(gates, 4, axis=1)
        c_new = jax.nn.sigmoid(f) * c + jax.nn.sigmoid(i) * jnp.tanh(g)
        h_new = jax.nn.sigmoid(o) * jnp.tanh(c_new)
        return h_new, c_new

    for t in range(T):
        for l in range(L):
            inp_f = x[:, t, :] if l == 0 else hf[l - 1][0]
            inp_b = x[:, T - 1 - t, :] if l == 0 else hb[l - 1][0]
            hf[l] = cell(inp_f, hf[l], layer_params[l])
            hb[l] = cell(inp_b, hb[l], layer_params[l])
        outs.append(hf[L - 1][0])
        outs_rev.append(hb[L - 1][0])
    feat = jnp.concatenate([outs[-1], outs_rev[0]], axis=1)
    return feat @ fc_w.T + fc_b


if __name__ == "__main__":
    # Module hyper-parameters (small, consistent with the forward pass).
    B, T, I, H, L, O = 4, 8, 16, 32, 2, 10

    key = jax.random.PRNGKey(0)
    std = 1.0 / jnp.sqrt(H)
    keys = jax.random.split(key, 4 * L + 3)

    def uni(k, shape):
        return jax.random.uniform(k, shape, jnp.float32, -std, std)

    layer_params = []
    for l in range(L):
        in_dim = I if l == 0 else H
        kidx = 4 * l
        layer_params.append((
            uni(keys[kidx + 0], (4 * H, in_dim)),  # x2h weight
            uni(keys[kidx + 1], (4 * H, H)),       # h2h weight
            uni(keys[kidx + 2], (4 * H,)),         # x2h bias
            uni(keys[kidx + 3], (4 * H,)),         # h2h bias
        ))
    fc_w = uni(keys[4 * L + 0], (O, 2 * H))
    fc_b = uni(keys[4 * L + 1], (O,))
    x = jax.random.normal(keys[4 * L + 2], (B, T, I), jnp.float32)

    out = bidir_recurrent_forward(x, layer_params, fc_w, fc_b,
                                  hidden_size=H, num_layers=L)
    out = jax.block_until_ready(out)

    ref = _reference(x, layer_params, fc_w, fc_b, hidden_size=H, num_layers=L)
    assert out.shape == (B, O), out.shape
    assert jnp.allclose(out, ref, atol=1e-3, rtol=1e-3), \
        float(jnp.max(jnp.abs(out - ref)))

    print("KERNEL_OK")
</pallas_src>

<mosaic_0001>
module attributes {stable_mosaic.version = 11 : i64} {
  func.func @kernel(%arg0: memref<32x16xf32, #tpu.memory_space<vmem>>, %arg1: memref<16x128xf32, #tpu.memory_space<vmem>>, %arg2: memref<32x128xf32, #tpu.memory_space<vmem>>, %arg3: memref<1x128xf32, #tpu.memory_space<vmem>>, %arg4: memref<64x128xf32, #tpu.memory_space<vmem>>, %arg5: memref<1x128xf32, #tpu.memory_space<vmem>>, %arg6: memref<32x10xf32, #tpu.memory_space<vmem>>, %arg7: memref<32x10xf32, #tpu.memory_space<vmem>>, %arg8: memref<1x10xf32, #tpu.memory_space<vmem>>, %arg9: memref<4x10xf32, #tpu.memory_space<vmem>>) attributes {dimension_semantics = [], scalar_prefetch = 0 : i64, scratch_operands = 0 : i64, tpu.core_type = #tpu.core_type<tc>} {
    %c0 = arith.constant 0 : index
    %c0_0 = arith.constant 0 : index
    %0 = vector.load %arg6[%c0, %c0_0] : memref<32x10xf32, #tpu.memory_space<vmem>>, vector<32x10xf32>
    %c0_1 = arith.constant 0 : index
    %c0_2 = arith.constant 0 : index
    %1 = vector.load %arg7[%c0_1, %c0_2] : memref<32x10xf32, #tpu.memory_space<vmem>>, vector<32x10xf32>
    %c0_3 = arith.constant 0 : index
    %c0_4 = arith.constant 0 : index
    %2 = vector.load %arg8[%c0_3, %c0_4] : memref<1x10xf32, #tpu.memory_space<vmem>>, vector<1x10xf32>
    %c0_5 = arith.constant 0 : index
    %c0_6 = arith.constant 0 : index
    %3 = vector.load %arg1[%c0_5, %c0_6] : memref<16x128xf32, #tpu.memory_space<vmem>>, vector<16x128xf32>
    %c0_7 = arith.constant 0 : index
    %c0_8 = arith.constant 0 : index
    %4 = vector.load %arg2[%c0_7, %c0_8] : memref<32x128xf32, #tpu.memory_space<vmem>>, vector<32x128xf32>
    %c0_9 = arith.constant 0 : index
    %c0_10 = arith.constant 0 : index
    %5 = vector.load %arg3[%c0_9, %c0_10] : memref<1x128xf32, #tpu.memory_space<vmem>>, vector<1x128xf32>
    %c0_11 = arith.constant 0 : index
    %c0_12 = arith.constant 0 : index
    %6 = vector.load %arg4[%c0_11, %c0_12] : memref<64x128xf32, #tpu.memory_space<vmem>>, vector<64x128xf32>
    %c0_13 = arith.constant 0 : index
    %c0_14 = arith.constant 0 : index
    %7 = vector.load %arg5[%c0_13, %c0_14] : memref<1x128xf32, #tpu.memory_space<vmem>>, vector<1x128xf32>
    %8 = vector.shape_cast %7 : vector<1x128xf32> to vector<1x128xf32>
    %9 = vector.broadcast %8 : vector<1x128xf32> to vector<4x128xf32>
    %c0_15 = arith.constant 0 : index
    %c0_16 = arith.constant 0 : index
    %10 = vector.load %arg0[%c0_15, %c0_16] : memref<32x16xf32, #tpu.memory_space<vmem>>, vector<32x16xf32>
    %cst = arith.constant dense<0.000000e+00> : vector<32x128xf32>
    %11 = tpu.matmul %10, %3, %cst {dimension_numbers = #tpu.dot_dimension_numbers<[1], [0], [0], [1], [0, 0, 1, 1], [], []>} : vector<32x16xf32>, vector<16x128xf32>, vector<32x128xf32> -> vector<32x128xf32>
    %12 = vector.shape_cast %5 : vector<1x128xf32> to vector<1x128xf32>
    %13 = vector.broadcast %12 : vector<1x128xf32> to vector<32x128xf32>
    %14 = arith.addf %11, %13 : vector<32x128xf32>
    %15 = vector.extract_strided_slice %14 {offsets = [28, 0], sizes = [4, 128], strides = [1, 1]} : vector<32x128xf32> to vector<4x128xf32>
    %16 = arith.negf %15 : vector<4x128xf32>
    %17 = math.exp %16 : vector<4x128xf32>
    %cst_17 = arith.constant 1.000000e+00 : f32
    %18 = vector.broadcast %cst_17 : f32 to vector<4x128xf32>
    %19 = arith.addf %18, %17 : vector<4x128xf32>
    %20 = arith.divf %18, %19 : vector<4x128xf32>
    %21 = vector.extract_strided_slice %15 {offsets = [0, 64], sizes = [4, 32], strides = [1, 1]} : vector<4x128xf32> to vector<4x32xf32>
    %22 = math.tanh %21 : vector<4x32xf32>
    %23 = vector.extract_strided_slice %20 {offsets = [0, 0], sizes = [4, 32], strides = [1, 1]} : vector<4x128xf32> to vector<4x32xf32>
    %24 = arith.mulf %23, %22 : vector<4x32xf32>
    %25 = vector.extract_strided_slice %20 {offsets = [0, 96], sizes = [4, 32], strides = [1, 1]} : vector<4x128xf32> to vector<4x32xf32>
    %26 = math.tanh %24 : vector<4x32xf32>
    %27 = arith.mulf %25, %26 : vector<4x32xf32>
    %28 = vector.extract_strided_slice %6 {offsets = [0, 0], sizes = [32, 128], strides = [1, 1]} : vector<64x128xf32> to vector<32x128xf32>
    %cst_18 = arith.constant dense<0.000000e+00> : vector<4x128xf32>
    %29 = tpu.matmul %27, %28, %cst_18 {dimension_numbers = #tpu.dot_dimension_numbers<[1], [0], [0], [1], [0, 0, 1, 1], [], []>} : vector<4x32xf32>, vector<32x128xf32>, vector<4x128xf32> -> vector<4x128xf32>
    %30 = arith.addf %29, %9 : vector<4x128xf32>
    %31 = arith.negf %30 : vector<4x128xf32>
    %32 = math.exp %31 : vector<4x128xf32>
    %cst_19 = arith.constant 1.000000e+00 : f32
    %33 = vector.broadcast %cst_19 : f32 to vector<4x128xf32>
    %34 = arith.addf %33, %32 : vector<4x128xf32>
    %35 = arith.divf %33, %34 : vector<4x128xf32>
    %36 = vector.extract_strided_slice %30 {offsets = [0, 64], sizes = [4, 32], strides = [1, 1]} : vector<4x128xf32> to vector<4x32xf32>
    %37 = math.tanh %36 : vector<4x32xf32>
    %38 = vector.extract_strided_slice %35 {offsets = [0, 0], sizes = [4, 32], strides = [1, 1]} : vector<4x128xf32> to vector<4x32xf32>
    %39 = arith.mulf %38, %37 : vector<4x32xf32>
    %40 = vector.extract_strided_slice %35 {offsets = [0, 96], sizes = [4, 32], strides = [1, 1]} : vector<4x128xf32> to vector<4x32xf32>
    %41 = math.tanh %39 : vector<4x32xf32>
    %42 = arith.mulf %40, %41 : vector<4x32xf32>
    %cst_20 = arith.constant 0.000000e+00 : f32
    %43 = vector.broadcast %cst_20 : f32 to vector<4x32xf32>
    %44 = vector.extract_strided_slice %14 {offsets = [0, 0], sizes = [4, 128], strides = [1, 1]} : vector<32x128xf32> to vector<4x128xf32>
    %cst_21 = arith.constant dense<0.000000e+00> : vector<4x128xf32>
    %45 = tpu.matmul %43, %4, %cst_21 {dimension_numbers = #tpu.dot_dimension_numbers<[1], [0], [0], [1], [0, 0, 1, 1], [], []>} : vector<4x32xf32>, vector<32x128xf32>, vector<4x128xf32> -> vector<4x128xf32>
    %46 = arith.addf %44, %45 : vector<4x128xf32>
    %47 = arith.negf %46 : vector<4x128xf32>
    %48 = math.exp %47 : vector<4x128xf32>
    %cst_22 = arith.constant 1.000000e+00 : f32
    %49 = vector.broadcast %cst_22 : f32 to vector<4x128xf32>
    %50 = arith.addf %49, %48 : vector<4x128xf32>
    %51 = arith.divf %49, %50 : vector<4x128xf32>
    %52 = vector.extract_strided_slice %46 {offsets = [0, 64], sizes = [4, 32], strides = [1, 1]} : vector<4x128xf32> to vector<4x32xf32>
    %53 = math.tanh %52 : vector<4x32xf32>
    %54 = vector.extract_strided_slice %51 {offsets = [0, 0], sizes = [4, 32], strides = [1, 1]} : vector<4x128xf32> to vector<4x32xf32>
    %55 = vector.extract_strided_slice %51 {offsets = [0, 32], sizes = [4, 32], strides = [1, 1]} : vector<4x128xf32> to vector<4x32xf32>
    %56 = vector.extract_strided_slice %51 {offsets = [0, 96], sizes = [4, 32], strides = [1, 1]} : vector<4x128xf32> to vector<4x32xf32>
    %57 = arith.mulf %55, %43 : vector<4x32xf32>
    %58 = arith.mulf %54, %53 : vector<4x32xf32>
    %59 = arith.addf %57, %58 : vector<4x32xf32>
    %60 = math.tanh %59 : vector<4x32xf32>
    %61 = arith.mulf %56, %60 : vector<4x32xf32>
    %62 = tpu.concatenate %61, %43 in 1 : vector<4x32xf32>, vector<4x32xf32> -> vector<4x64xf32>
    %cst_23 = arith.constant dense<0.000000e+00> : vector<4x128xf32>
    %63 = tpu.matmul %62, %6, %cst_23 {dimension_numbers = #tpu.dot_dimension_numbers<[1], [0], [0], [1], [0, 0, 1, 1], [], []>} : vector<4x64xf32>, vector<64x128xf32>, vector<4x128xf32> -> vector<4x128xf32>
    %64 = arith.addf %63, %9 : vector<4x128xf32>
    %65 = arith.negf %64 : vector<4x128xf32>
    %66 = math.exp %65 : vector<4x128xf32>
    %cst_24 = arith.constant 1.000000e+00 : f32
    %67 = vector.broadcast %cst_24 : f32 to vector<4x128xf32>
    %68 = arith.addf %67, %66 : vector<4x128xf32>
    %69 = arith.divf %67, %68 : vector<4x128xf32>
    %70 = vector.extract_strided_slice %64 {offsets = [0, 64], sizes = [4, 32], strides = [1, 1]} : vector<4x128xf32> to vector<4x32xf32>
    %71 = math.tanh %70 : vector<4x32xf32>
    %72 = vector.extract_strided_slice %69 {offsets = [0, 0], sizes = [4, 32], strides = [1, 1]} : vector<4x128xf32> to vector<4x32xf32>
    %73 = vector.extract_strided_slice %69 {offsets = [0, 32], sizes = [4, 32], strides = [1, 1]} : vector<4x128xf32> to vector<4x32xf32>
    %74 = vector.extract_strided_slice %69 {offsets = [0, 96], sizes = [4, 32], strides = [1, 1]} : vector<4x128xf32> to vector<4x32xf32>
    %75 = arith.mulf %73, %43 : vector<4x32xf32>
    %76 = arith.mulf %72, %71 : vector<4x32xf32>
    %77 = arith.addf %75, %76 : vector<4x32xf32>
    %78 = math.tanh %77 : vector<4x32xf32>
    %79 = arith.mulf %74, %78 : vector<4x32xf32>
    %80 = vector.extract_strided_slice %14 {offsets = [4, 0], sizes = [4, 128], strides = [1, 1]} : vector<32x128xf32> to vector<4x128xf32>
    %cst_25 = arith.constant dense<0.000000e+00> : vector<4x128xf32>
    %81 = tpu.matmul %61, %4, %cst_25 {dimension_numbers = #tpu.dot_dimension_numbers<[1], [0], [0], [1], [0, 0, 1, 1], [], []>} : vector<4x32xf32>, vector<32x128xf32>, vector<4x128xf32> -> vector<4x128xf32>
    %82 = arith.addf %80, %81 : vector<4x128xf32>
    %83 = arith.negf %82 : vector<4x128xf32>
    %84 = math.exp %83 : vector<4x128xf32>
    %cst_26 = arith.constant 1.000000e+00 : f32
    %85 = vector.broadcast %cst_26 : f32 to vector<4x128xf32>
    %86 = arith.addf %85, %84 : vector<4x128xf32>
    %87 = arith.divf %85, %86 : vector<4x128xf32>
    %88 = vector.extract_strided_slice %82 {offsets = [0, 64], sizes = [4, 32], strides = [1, 1]} : vector<4x128xf32> to vector<4x32xf32>
    %89 = math.tanh %88 : vector<4x32xf32>
    %90 = vector.extract_strided_slice %87 {offsets = [0, 0], sizes = [4, 32], strides = [1, 1]} : vector<4x128xf32> to vector<4x32xf32>
    %91 = vector.extract_strided_slice %87 {offsets = [0, 32], sizes = [4, 32], strides = [1, 1]} : vector<4x128xf32> to vector<4x32xf32>
    %92 = vector.extract_strided_slice %87 {offsets = [0, 96], sizes = [4, 32], strides = [1, 1]} : vector<4x128xf32> to vector<4x32xf32>
    %93 = arith.mulf %91, %59 : vector<4x32xf32>
    %94 = arith.mulf %90, %89 : vector<4x32xf32>
    %95 = arith.addf %93, %94 : vector<4x32xf32>
    %96 = math.tanh %95 : vector<4x32xf32>
    %97 = arith.mulf %92, %96 : vector<4x32xf32>
    %98 = tpu.concatenate %97, %79 in 1 : vector<4x32xf32>, vector<4x32xf32> -> vector<4x64xf32>
    %cst_27 = arith.constant dense<0.000000e+00> : vector<4x128xf32>
    %99 = tpu.matmul %98, %6, %cst_27 {dimension_numbers = #tpu.dot_dimension_numbers<[1], [0], [0], [1], [0, 0, 1, 1], [], []>} : vector<4x64xf32>, vector<64x128xf32>, vector<4x128xf32> -> vector<4x128xf32>
    %100 = arith.addf %99, %9 : vector<4x128xf32>
    %101 = arith.negf %100 : vector<4x128xf32>
    %102 = math.exp %101 : vector<4x128xf32>
    %cst_28 = arith.constant 1.000000e+00 : f32
    %103 = vector.broadcast %cst_28 : f32 to vector<4x128xf32>
    %104 = arith.addf %103, %102 : vector<4x128xf32>
    %105 = arith.divf %103, %104 : vector<4x128xf32>
    %106 = vector.extract_strided_slice %100 {offsets = [0, 64], sizes = [4, 32], strides = [1, 1]} : vector<4x128xf32> to vector<4x32xf32>
    %107 = math.tanh %106 : vector<4x32xf32>
    %108 = vector.extract_strided_slice %105 {offsets = [0, 0], sizes = [4, 32], strides = [1, 1]} : vector<4x128xf32> to vector<4x32xf32>
    %109 = vector.extract_strided_slice %105 {offsets = [0, 32], sizes = [4, 32], strides = [1, 1]} : vector<4x128xf32> to vector<4x32xf32>
    %110 = vector.extract_strided_slice %105 {offsets = [0, 96], sizes = [4, 32], strides = [1, 1]} : vector<4x128xf32> to vector<4x32xf32>
    %111 = arith.mulf %109, %77 : vector<4x32xf32>
    %112 = arith.mulf %108, %107 : vector<4x32xf32>
    %113 = arith.addf %111, %112 : vector<4x32xf32>
    %114 = math.tanh %113 : vector<4x32xf32>
    %115 = arith.mulf %110, %114 : vector<4x32xf32>
    %116 = vector.extract_strided_slice %14 {offsets = [8, 0], sizes = [4, 128], strides = [1, 1]} : vector<32x128xf32> to vector<4x128xf32>
    %cst_29 = arith.constant dense<0.000000e+00> : vector<4x128xf32>
    %117 = tpu.matmul %97, %4, %cst_29 {dimension_numbers = #tpu.dot_dimension_numbers<[1], [0], [0], [1], [0, 0, 1, 1], [], []>} : vector<4x32xf32>, vector<32x128xf32>, vector<4x128xf32> -> vector<4x128xf32>
    %118 = arith.addf %116, %117 : vector<4x128xf32>
    %119 = arith.negf %118 : vector<4x128xf32>
    %120 = math.exp %119 : vector<4x128xf32>
    %cst_30 = arith.constant 1.000000e+00 : f32
    %121 = vector.broadcast %cst_30 : f32 to vector<4x128xf32>
    %122 = arith.addf %121, %120 : vector<4x128xf32>
    %123 = arith.divf %121, %122 : vector<4x128xf32>
    %124 = vector.extract_strided_slice %118 {offsets = [0, 64], sizes = [4, 32], strides = [1, 1]} : vector<4x128xf32> to vector<4x32xf32>
    %125 = math.tanh %124 : vector<4x32xf32>
    %126 = vector.extract_strided_slice %123 {offsets = [0, 0], sizes = [4, 32], strides = [1, 1]} : vector<4x128xf32> to vector<4x32xf32>
    %127 = vector.extract_strided_slice %123 {offsets = [0, 32], sizes = [4, 32], strides = [1, 1]} : vector<4x128xf32> to vector<4x32xf32>
    %128 = vector.extract_strided_slice %123 {offsets = [0, 96], sizes = [4, 32], strides = [1, 1]} : vector<4x128xf32> to vector<4x32xf32>
    %129 = arith.mulf %127, %95 : vector<4x32xf32>
    %130 = arith.mulf %126, %125 : vector<4x32xf32>
    %131 = arith.addf %129, %130 : vector<4x32xf32>
    %132 = math.tanh %131 : vector<4x32xf32>
    %133 = arith.mulf %128, %132 : vector<4x32xf32>
    %134 = tpu.concatenate %133, %115 in 1 : vector<4x32xf32>, vector<4x32xf32> -> vector<4x64xf32>
    %cst_31 = arith.constant dense<0.000000e+00> : vector<4x128xf32>
    %135 = tpu.matmul %134, %6, %cst_31 {dimension_numbers = #tpu.dot_dimension_numbers<[1], [0], [0], [1], [0, 0, 1, 1], [], []>} : vector<4x64xf32>, vector<64x128xf32>, vector<4x128xf32> -> vector<4x128xf32>
    %136 = arith.addf %135, %9 : vector<4x128xf32>
    %137 = arith.negf %136 : vector<4x128xf32>
    %138 = math.exp %137 : vector<4x128xf32>
    %cst_32 = arith.constant 1.000000e+00 : f32
    %139 = vector.broadcast %cst_32 : f32 to vector<4x128xf32>
    %140 = arith.addf %139, %138 : vector<4x128xf32>
    %141 = arith.divf %139, %140 : vector<4x128xf32>
    %142 = vector.extract_strided_slice %136 {offsets = [0, 64], sizes = [4, 32], strides = [1, 1]} : vector<4x128xf32> to vector<4x32xf32>
    %143 = math.tanh %142 : vector<4x32xf32>
    %144 = vector.extract_strided_slice %141 {offsets = [0, 0], sizes = [4, 32], strides = [1, 1]} : vector<4x128xf32> to vector<4x32xf32>
    %145 = vector.extract_strided_slice %141 {offsets = [0, 32], sizes = [4, 32], strides = [1, 1]} : vector<4x128xf32> to vector<4x32xf32>
    %146 = vector.extract_strided_slice %141 {offsets = [0, 96], sizes = [4, 32], strides = [1, 1]} : vector<4x128xf32> to vector<4x32xf32>
    %147 = arith.mulf %145, %113 : vector<4x32xf32>
    %148 = arith.mulf %144, %143 : vector<4x32xf32>
    %149 = arith.addf %147, %148 : vector<4x32xf32>
    %150 = math.tanh %149 : vector<4x32xf32>
    %151 = arith.mulf %146, %150 : vector<4x32xf32>
    %152 = vector.extract_strided_slice %14 {offsets = [12, 0], sizes = [4, 128], strides = [1, 1]} : vector<32x128xf32> to vector<4x128xf32>
    %cst_33 = arith.constant dense<0.000000e+00> : vector<4x128xf32>
    %153 = tpu.matmul %133, %4, %cst_33 {dimension_numbers = #tpu.dot_dimension_numbers<[1], [0], [0], [1], [0, 0, 1, 1], [], []>} : vector<4x32xf32>, vector<32x128xf32>, vector<4x128xf32> -> vector<4x128xf32>
    %154 = arith.addf %152, %153 : vector<4x128xf32>
    %155 = arith.negf %154 : vector<4x128xf32>
    %156 = math.exp %155 : vector<4x128xf32>
    %cst_34 = arith.constant 1.000000e+00 : f32
    %157 = vector.broadcast %cst_34 : f32 to vector<4x128xf32>
    %158 = arith.addf %157, %156 : vector<4x128xf32>
    %159 = arith.divf %157, %158 : vector<4x128xf32>
    %160 = vector.extract_strided_slice %154 {offsets = [0, 64], sizes = [4, 32], strides = [1, 1]} : vector<4x128xf32> to vector<4x32xf32>
    %161 = math.tanh %160 : vector<4x32xf32>
    %162 = vector.extract_strided_slice %159 {offsets = [0, 0], sizes = [4, 32], strides = [1, 1]} : vector<4x128xf32> to vector<4x32xf32>
    %163 = vector.extract_strided_slice %159 {offsets = [0, 32], sizes = [4, 32], strides = [1, 1]} : vector<4x128xf32> to vector<4x32xf32>
    %164 = vector.extract_strided_slice %159 {offsets = [0, 96], sizes = [4, 32], strides = [1, 1]} : vector<4x128xf32> to vector<4x32xf32>
    %165 = arith.mulf %163, %131 : vector<4x32xf32>
    %166 = arith.mulf %162, %161 : vector<4x32xf32>
    %167 = arith.addf %165, %166 : vector<4x32xf32>
    %168 = math.tanh %167 : vector<4x32xf32>
    %169 = arith.mulf %164, %168 : vector<4x32xf32>
    %170 = tpu.concatenate %169, %151 in 1 : vector<4x32xf32>, vector<4x32xf32> -> vector<4x64xf32>
    %cst_35 = arith.constant dense<0.000000e+00> : vector<4x128xf32>
    %171 = tpu.matmul %170, %6, %cst_35 {dimension_numbers = #tpu.dot_dimension_numbers<[1], [0], [0], [1], [0, 0, 1, 1], [], []>} : vector<4x64xf32>, vector<64x128xf32>, vector<4x128xf32> -> vector<4x128xf32>
    %172 = arith.addf %171, %9 : vector<4x128xf32>
    %173 = arith.negf %172 : vector<4x128xf32>
    %174 = math.exp %173 : vector<4x128xf32>
    %cst_36 = arith.constant 1.000000e+00 : f32
    %175 = vector.broadcast %cst_36 : f32 to vector<4x128xf32>
    %176 = arith.addf %175, %174 : vector<4x128xf32>
    %177 = arith.divf %175, %176 : vector<4x128xf32>
    %178 = vector.extract_strided_slice %172 {offsets = [0, 64], sizes = [4, 32], strides = [1, 1]} : vector<4x128xf32> to vector<4x32xf32>
    %179 = math.tanh %178 : vector<4x32xf32>
    %180 = vector.extract_strided_slice %177 {offsets = [0, 0], sizes = [4, 32], strides = [1, 1]} : vector<4x128xf32> to vector<4x32xf32>
    %181 = vector.extract_strided_slice %177 {offsets = [0, 32], sizes = [4, 32], strides = [1, 1]} : vector<4x128xf32> to vector<4x32xf32>
    %182 = vector.extract_strided_slice %177 {offsets = [0, 96], sizes = [4, 32], strides = [1, 1]} : vector<4x128xf32> to vector<4x32xf32>
    %183 = arith.mulf %181, %149 : vector<4x32xf32>
    %184 = arith.mulf %180, %179 : vector<4x32xf32>
    %185 = arith.addf %183, %184 : vector<4x32xf32>
    %186 = math.tanh %185 : vector<4x32xf32>
    %187 = arith.mulf %182, %186 : vector<4x32xf32>
    %188 = vector.extract_strided_slice %14 {offsets = [16, 0], sizes = [4, 128], strides = [1, 1]} : vector<32x128xf32> to vector<4x128xf32>
    %cst_37 = arith.constant dense<0.000000e+00> : vector<4x128xf32>
    %189 = tpu.matmul %169, %4, %cst_37 {dimension_numbers = #tpu.dot_dimension_numbers<[1], [0], [0], [1], [0, 0, 1, 1], [], []>} : vector<4x32xf32>, vector<32x128xf32>, vector<4x128xf32> -> vector<4x128xf32>
    %190 = arith.addf %188, %189 : vector<4x128xf32>
    %191 = arith.negf %190 : vector<4x128xf32>
    %192 = math.exp %191 : vector<4x128xf32>
    %cst_38 = arith.constant 1.000000e+00 : f32
    %193 = vector.broadcast %cst_38 : f32 to vector<4x128xf32>
    %194 = arith.addf %193, %192 : vector<4x128xf32>
    %195 = arith.divf %193, %194 : vector<4x128xf32>
    %196 = vector.extract_strided_slice %190 {offsets = [0, 64], sizes = [4, 32], strides = [1, 1]} : vector<4x128xf32> to vector<4x32xf32>
    %197 = math.tanh %196 : vector<4x32xf32>
    %198 = vector.extract_strided_slice %195 {offsets = [0, 0], sizes = [4, 32], strides = [1, 1]} : vector<4x128xf32> to vector<4x32xf32>
    %199 = vector.extract_strided_slice %195 {offsets = [0, 32], sizes = [4, 32], strides = [1, 1]} : vector<4x128xf32> to vector<4x32xf32>
    %200 = vector.extract_strided_slice %195 {offsets = [0, 96], sizes = [4, 32], strides = [1, 1]} : vector<4x128xf32> to vector<4x32xf32>
    %201 = arith.mulf %199, %167 : vector<4x32xf32>
    %202 = arith.mulf %198, %197 : vector<4x32xf32>
    %203 = arith.addf %201, %202 : vector<4x32xf32>
    %204 = math.tanh %203 : vector<4x32xf32>
    %205 = arith.mulf %200, %204 : vector<4x32xf32>
    %206 = tpu.concatenate %205, %187 in 1 : vector<4x32xf32>, vector<4x32xf32> -> vector<4x64xf32>
    %cst_39 = arith.constant dense<0.000000e+00> : vector<4x128xf32>
    %207 = tpu.matmul %206, %6, %cst_39 {dimension_numbers = #tpu.dot_dimension_numbers<[1], [0], [0], [1], [0, 0, 1, 1], [], []>} : vector<4x64xf32>, vector<64x128xf32>, vector<4x128xf32> -> vector<4x128xf32>
    %208 = arith.addf %207, %9 : vector<4x128xf32>
    %209 = arith.negf %208 : vector<4x128xf32>
    %210 = math.exp %209 : vector<4x128xf32>
    %cst_40 = arith.constant 1.000000e+00 : f32
    %211 = vector.broadcast %cst_40 : f32 to vector<4x128xf32>
    %212 = arith.addf %211, %210 : vector<4x128xf32>
    %213 = arith.divf %211, %212 : vector<4x128xf32>
    %214 = vector.extract_strided_slice %208 {offsets = [0, 64], sizes = [4, 32], strides = [1, 1]} : vector<4x128xf32> to vector<4x32xf32>
    %215 = math.tanh %214 : vector<4x32xf32>
    %216 = vector.extract_strided_slice %213 {offsets = [0, 0], sizes = [4, 32], strides = [1, 1]} : vector<4x128xf32> to vector<4x32xf32>
    %217 = vector.extract_strided_slice %213 {offsets = [0, 32], sizes = [4, 32], strides = [1, 1]} : vector<4x128xf32> to vector<4x32xf32>
    %218 = vector.extract_strided_slice %213 {offsets = [0, 96], sizes = [4, 32], strides = [1, 1]} : vector<4x128xf32> to vector<4x32xf32>
    %219 = arith.mulf %217, %185 : vector<4x32xf32>
    %220 = arith.mulf %216, %215 : vector<4x32xf32>
    %221 = arith.addf %219, %220 : vector<4x32xf32>
    %222 = math.tanh %221 : vector<4x32xf32>
    %223 = arith.mulf %218, %222 : vector<4x32xf32>
    %224 = vector.extract_strided_slice %14 {offsets = [20, 0], sizes = [4, 128], strides = [1, 1]} : vector<32x128xf32> to vector<4x128xf32>
    %cst_41 = arith.constant dense<0.000000e+00> : vector<4x128xf32>
    %225 = tpu.matmul %205, %4, %cst_41 {dimension_numbers = #tpu.dot_dimension_numbers<[1], [0], [0], [1], [0, 0, 1, 1], [], []>} : vector<4x32xf32>, vector<32x128xf32>, vector<4x128xf32> -> vector<4x128xf32>
    %226 = arith.addf %224, %225 : vector<4x128xf32>
    %227 = arith.negf %226 : vector<4x128xf32>
    %228 = math.exp %227 : vector<4x128xf32>
    %cst_42 = arith.constant 1.000000e+00 : f32
    %229 = vector.broadcast %cst_42 : f32 to vector<4x128xf32>
    %230 = arith.addf %229, %228 : vector<4x128xf32>
    %231 = arith.divf %229, %230 : vector<4x128xf32>
    %232 = vector.extract_strided_slice %226 {offsets = [0, 64], sizes = [4, 32], strides = [1, 1]} : vector<4x128xf32> to vector<4x32xf32>
    %233 = math.tanh %232 : vector<4x32xf32>
    %234 = vector.extract_strided_slice %231 {offsets = [0, 0], sizes = [4, 32], strides = [1, 1]} : vector<4x128xf32> to vector<4x32xf32>
    %235 = vector.extract_strided_slice %231 {offsets = [0, 32], sizes = [4, 32], strides = [1, 1]} : vector<4x128xf32> to vector<4x32xf32>
    %236 = vector.extract_strided_slice %231 {offsets = [0, 96], sizes = [4, 32], strides = [1, 1]} : vector<4x128xf32> to vector<4x32xf32>
    %237 = arith.mulf %235, %203 : vector<4x32xf32>
    %238 = arith.mulf %234, %233 : vector<4x32xf32>
    %239 = arith.addf %237, %238 : vector<4x32xf32>
    %240 = math.tanh %239 : vector<4x32xf32>
    %241 = arith.mulf %236, %240 : vector<4x32xf32>
    %242 = tpu.concatenate %241, %223 in 1 : vector<4x32xf32>, vector<4x32xf32> -> vector<4x64xf32>
    %cst_43 = arith.constant dense<0.000000e+00> : vector<4x128xf32>
    %243 = tpu.matmul %242, %6, %cst_43 {dimension_numbers = #tpu.dot_dimension_numbers<[1], [0], [0], [1], [0, 0, 1, 1], [], []>} : vector<4x64xf32>, vector<64x128xf32>, vector<4x128xf32> -> vector<4x128xf32>
    %244 = arith.addf %243, %9 : vector<4x128xf32>
    %245 = arith.negf %244 : vector<4x128xf32>
    %246 = math.exp %245 : vector<4x128xf32>
    %cst_44 = arith.constant 1.000000e+00 : f32
    %247 = vector.broadcast %cst_44 : f32 to vector<4x128xf32>
    %248 = arith.addf %247, %246 : vector<4x128xf32>
    %249 = arith.divf %247, %248 : vector<4x128xf32>
    %250 = vector.extract_strided_slice %244 {offsets = [0, 64], sizes = [4, 32], strides = [1, 1]} : vector<4x128xf32> to vector<4x32xf32>
    %251 = math.tanh %250 : vector<4x32xf32>
    %252 = vector.extract_strided_slice %249 {offsets = [0, 0], sizes = [4, 32], strides = [1, 1]} : vector<4x128xf32> to vector<4x32xf32>
    %253 = vector.extract_strided_slice %249 {offsets = [0, 32], sizes = [4, 32], strides = [1, 1]} : vector<4x128xf32> to vector<4x32xf32>
    %254 = vector.extract_strided_slice %249 {offsets = [0, 96], sizes = [4, 32], strides = [1, 1]} : vector<4x128xf32> to vector<4x32xf32>
    %255 = arith.mulf %253, %221 : vector<4x32xf32>
    %256 = arith.mulf %252, %251 : vector<4x32xf32>
    %257 = arith.addf %255, %256 : vector<4x32xf32>
    %258 = math.tanh %257 : vector<4x32xf32>
    %259 = arith.mulf %254, %258 : vector<4x32xf32>
    %260 = vector.extract_strided_slice %14 {offsets = [24, 0], sizes = [4, 128], strides = [1, 1]} : vector<32x128xf32> to vector<4x128xf32>
    %cst_45 = arith.constant dense<0.000000e+00> : vector<4x128xf32>
    %261 = tpu.matmul %241, %4, %cst_45 {dimension_numbers = #tpu.dot_dimension_numbers<[1], [0], [0], [1], [0, 0, 1, 1], [], []>} : vector<4x32xf32>, vector<32x128xf32>, vector<4x128xf32> -> vector<4x128xf32>
    %262 = arith.addf %260, %261 : vector<4x128xf32>
    %263 = arith.negf %262 : vector<4x128xf32>
    %264 = math.exp %263 : vector<4x128xf32>
    %cst_46 = arith.constant 1.000000e+00 : f32
    %265 = vector.broadcast %cst_46 : f32 to vector<4x128xf32>
    %266 = arith.addf %265, %264 : vector<4x128xf32>
    %267 = arith.divf %265, %266 : vector<4x128xf32>
    %268 = vector.extract_strided_slice %262 {offsets = [0, 64], sizes = [4, 32], strides = [1, 1]} : vector<4x128xf32> to vector<4x32xf32>
    %269 = math.tanh %268 : vector<4x32xf32>
    %270 = vector.extract_strided_slice %267 {offsets = [0, 0], sizes = [4, 32], strides = [1, 1]} : vector<4x128xf32> to vector<4x32xf32>
    %271 = vector.extract_strided_slice %267 {offsets = [0, 32], sizes = [4, 32], strides = [1, 1]} : vector<4x128xf32> to vector<4x32xf32>
    %272 = vector.extract_strided_slice %267 {offsets = [0, 96], sizes = [4, 32], strides = [1, 1]} : vector<4x128xf32> to vector<4x32xf32>
    %273 = arith.mulf %271, %239 : vector<4x32xf32>
    %274 = arith.mulf %270, %269 : vector<4x32xf32>
    %275 = arith.addf %273, %274 : vector<4x32xf32>
    %276 = math.tanh %275 : vector<4x32xf32>
    %277 = arith.mulf %272, %276 : vector<4x32xf32>
    %278 = tpu.concatenate %277, %259 in 1 : vector<4x32xf32>, vector<4x32xf32> -> vector<4x64xf32>
    %cst_47 = arith.constant dense<0.000000e+00> : vector<4x128xf32>
    %279 = tpu.matmul %278, %6, %cst_47 {dimension_numbers = #tpu.dot_dimension_numbers<[1], [0], [0], [1], [0, 0, 1, 1], [], []>} : vector<4x64xf32>, vector<64x128xf32>, vector<4x128xf32> -> vector<4x128xf32>
    %280 = arith.addf %279, %9 : vector<4x128xf32>
    %281 = arith.negf %280 : vector<4x128xf32>
    %282 = math.exp %281 : vector<4x128xf32>
    %cst_48 = arith.constant 1.000000e+00 : f32
    %283 = vector.broadcast %cst_48 : f32 to vector<4x128xf32>
    %284 = arith.addf %283, %282 : vector<4x128xf32>
    %285 = arith.divf %283, %284 : vector<4x128xf32>
    %286 = vector.extract_strided_slice %280 {offsets = [0, 64], sizes = [4, 32], strides = [1, 1]} : vector<4x128xf32> to vector<4x32xf32>
    %287 = math.tanh %286 : vector<4x32xf32>
    %288 = vector.extract_strided_slice %285 {offsets = [0, 0], sizes = [4, 32], strides = [1, 1]} : vector<4x128xf32> to vector<4x32xf32>
    %289 = vector.extract_strided_slice %285 {offsets = [0, 32], sizes = [4, 32], strides = [1, 1]} : vector<4x128xf32> to vector<4x32xf32>
    %290 = vector.extract_strided_slice %285 {offsets = [0, 96], sizes = [4, 32], strides = [1, 1]} : vector<4x128xf32> to vector<4x32xf32>
    %291 = arith.mulf %289, %257 : vector<4x32xf32>
    %292 = arith.mulf %288, %287 : vector<4x32xf32>
    %293 = arith.addf %291, %292 : vector<4x32xf32>
    %294 = math.tanh %293 : vector<4x32xf32>
    %295 = arith.mulf %290, %294 : vector<4x32xf32>
    %296 = vector.extract_strided_slice %14 {offsets = [28, 0], sizes = [4, 128], strides = [1, 1]} : vector<32x128xf32> to vector<4x128xf32>
    %cst_49 = arith.constant dense<0.000000e+00> : vector<4x128xf32>
    %297 = tpu.matmul %277, %4, %cst_49 {dimension_numbers = #tpu.dot_dimension_numbers<[1], [0], [0], [1], [0, 0, 1, 1], [], []>} : vector<4x32xf32>, vector<32x128xf32>, vector<4x128xf32> -> vector<4x128xf32>
    %298 = arith.addf %296, %297 : vector<4x128xf32>
    %299 = arith.negf %298 : vector<4x128xf32>
    %300 = math.exp %299 : vector<4x128xf32>
    %cst_50 = arith.constant 1.000000e+00 : f32
    %301 = vector.broadcast %cst_50 : f32 to vector<4x128xf32>
    %302 = arith.addf %301, %300 : vector<4x128xf32>
    %303 = arith.divf %301, %302 : vector<4x128xf32>
    %304 = vector.extract_strided_slice %298 {offsets = [0, 64], sizes = [4, 32], strides = [1, 1]} : vector<4x128xf32> to vector<4x32xf32>
    %305 = math.tanh %304 : vector<4x32xf32>
    %306 = vector.extract_strided_slice %303 {offsets = [0, 0], sizes = [4, 32], strides = [1, 1]} : vector<4x128xf32> to vector<4x32xf32>
    %307 = vector.extract_strided_slice %303 {offsets = [0, 32], sizes = [4, 32], strides = [1, 1]} : vector<4x128xf32> to vector<4x32xf32>
    %308 = vector.extract_strided_slice %303 {offsets = [0, 96], sizes = [4, 32], strides = [1, 1]} : vector<4x128xf32> to vector<4x32xf32>
    %309 = arith.mulf %307, %275 : vector<4x32xf32>
    %310 = arith.mulf %306, %305 : vector<4x32xf32>
    %311 = arith.addf %309, %310 : vector<4x32xf32>
    %312 = math.tanh %311 : vector<4x32xf32>
    %313 = arith.mulf %308, %312 : vector<4x32xf32>
    %314 = tpu.concatenate %313, %295 in 1 : vector<4x32xf32>, vector<4x32xf32> -> vector<4x64xf32>
    %cst_51 = arith.constant dense<0.000000e+00> : vector<4x128xf32>
    %315 = tpu.matmul %314, %6, %cst_51 {dimension_numbers = #tpu.dot_dimension_numbers<[1], [0], [0], [1], [0, 0, 1, 1], [], []>} : vector<4x64xf32>, vector<64x128xf32>, vector<4x128xf32> -> vector<4x128xf32>
    %316 = arith.addf %315, %9 : vector<4x128xf32>
    %317 = arith.negf %316 : vector<4x128xf32>
    %318 = math.exp %317 : vector<4x128xf32>
    %cst_52 = arith.constant 1.000000e+00 : f32
    %319 = vector.broadcast %cst_52 : f32 to vector<4x128xf32>
    %320 = arith.addf %319, %318 : vector<4x128xf32>
    %321 = arith.divf %319, %320 : vector<4x128xf32>
    %322 = vector.extract_strided_slice %316 {offsets = [0, 64], sizes = [4, 32], strides = [1, 1]} : vector<4x128xf32> to vector<4x32xf32>
    %323 = math.tanh %322 : vector<4x32xf32>
    %324 = vector.extract_strided_slice %321 {offsets = [0, 0], sizes = [4, 32], strides = [1, 1]} : vector<4x128xf32> to vector<4x32xf32>
    %325 = vector.extract_strided_slice %321 {offsets = [0, 32], sizes = [4, 32], strides = [1, 1]} : vector<4x128xf32> to vector<4x32xf32>
    %326 = vector.extract_strided_slice %321 {offsets = [0, 96], sizes = [4, 32], strides = [1, 1]} : vector<4x128xf32> to vector<4x32xf32>
    %327 = arith.mulf %325, %293 : vector<4x32xf32>
    %328 = arith.mulf %324, %323 : vector<4x32xf32>
    %329 = arith.addf %327, %328 : vector<4x32xf32>
    %330 = math.tanh %329 : vector<4x32xf32>
    %331 = arith.mulf %326, %330 : vector<4x32xf32>
    %cst_53 = arith.constant dense<0.000000e+00> : vector<4x10xf32>
    %332 = tpu.matmul %331, %0, %cst_53 {dimension_numbers = #tpu.dot_dimension_numbers<[1], [0], [0], [1], [0, 0, 1, 1], [], []>} : vector<4x32xf32>, vector<32x10xf32>, vector<4x10xf32> -> vector<4x10xf32>
    %cst_54 = arith.constant dense<0.000000e+00> : vector<4x10xf32>
    %333 = tpu.matmul %42, %1, %cst_54 {dimension_numbers = #tpu.dot_dimension_numbers<[1], [0], [0], [1], [0, 0, 1, 1], [], []>} : vector<4x32xf32>, vector<32x10xf32>, vector<4x10xf32> -> vector<4x10xf32>
    %334 = arith.addf %332, %333 : vector<4x10xf32>
    %335 = vector.broadcast %2 : vector<1x10xf32> to vector<4x10xf32>
    %336 = arith.addf %334, %335 : vector<4x10xf32>
    %c0_55 = arith.constant 0 : index
    %c0_56 = arith.constant 0 : index
    %337 = vector.load %arg9[%c0_55, %c0_56] : memref<4x10xf32, #tpu.memory_space<vmem>>, vector<4x10xf32>
    tpu.vector_store %arg9[%c0_55, %c0_56], %336 {strides = array<i32>} : memref<4x10xf32, #tpu.memory_space<vmem>>, vector<4x10xf32>,
    return
  }
}

</mosaic_0001>

<llo_original>
// kernel: tpu_custom_call.1
$region0: #{tpu_custom_call.1}
  #allocation0 [shape = 'u32[]', space=smem, size = 0x4, offset = 0x4, fixed_abs, tag = 'smem constant byte address 0x4 - core index']
  #allocation1 [shape = 'u32[144,128]{1,0:T(1,128)}', space=vmem, size = 0x12000, scoped, tag = 'internal scratch']
  %s0 = inlined_call_operand.vmem [shape: f32[32,16], index: 0, kind: input, shape index: {}]
  %s1 = inlined_call_operand.vmem [shape: f32[16,128], index: 1, kind: input, shape index: {}]
  %s2 = inlined_call_operand.vmem [shape: f32[32,128], index: 2, kind: input, shape index: {}]
  %s3 = inlined_call_operand.vmem [shape: f32[1,128], index: 3, kind: input, shape index: {}]
  %s4 = inlined_call_operand.vmem [shape: f32[64,128], index: 4, kind: input, shape index: {}]
  %s5 = inlined_call_operand.vmem [shape: f32[1,128], index: 5, kind: input, shape index: {}]
  %s6 = inlined_call_operand.vmem [shape: f32[32,10], index: 6, kind: input, shape index: {}]
  %s7 = inlined_call_operand.vmem [shape: f32[32,10], index: 7, kind: input, shape index: {}]
  %s8 = inlined_call_operand.vmem [shape: f32[1,10], index: 8, kind: input, shape index: {}]
  %s9 = inlined_call_operand.hbm [shape: f32[4,10], index: 9, kind: output, shape index: {}]
  %s10 = sld [smem:[#allocation0]]
  $region46: #{tpu_custom_call.1} parent=0
    _
  %s12 = ssub.s32 1, %s10
  %s13 = scalar_select 0, %s12, %s10
  $region1: #{tpu_custom_call.1} parent=0
    #allocation2 [shape = 'u8[2048]{0}', space=vmem, size = 0x800, scoped, tag = 'output window, operand 0, single buffered']
    #allocation3 [shape = 's32[1]{0}', space=sflag, size = 0x4, scoped, tag = 'scoped memory for tpu_custom_call.1']
    %14 = vsyncpa [#allocation3], 0
    // Predicated region
    $region2: #{tpu_custom_call.1} parent=1 // pred_check
      _
    $region3: #{tpu_custom_call.1} parent=1 // pred_check_branch
      %16 = sbr.rel (0) target = $region5
    $region4: #{tpu_custom_call.1} parent=1 // pred_region
      _
    $region5: #{tpu_custom_call.1} parent=1 // pred_fallthru
      _
    // Predicated region
    $region6: #{tpu_custom_call.1} parent=1 // pred_check
      _
    $region7: #{tpu_custom_call.1} parent=1 // pred_check_branch
      %18 = sbr.rel (0) target = $region9
    $region8: #{tpu_custom_call.1} parent=1 // pred_region
      _
    $region9: #{tpu_custom_call.1} parent=1 // pred_fallthru
      _
    // Predicated region
    $region10: #{tpu_custom_call.1} parent=1 // pred_check
      _
    $region11: #{tpu_custom_call.1} parent=1 // pred_check_branch
      %20 = sbr.rel (0) target = $region13
    $region12: #{tpu_custom_call.1} parent=1 // pred_region
      _
    $region13: #{tpu_custom_call.1} parent=1 // pred_fallthru
      _
    // Predicated region
    $region14: #{tpu_custom_call.1} parent=1 // pred_check
      _
    $region15: #{tpu_custom_call.1} parent=1 // pred_check_branch
      %22 = sbr.rel (0) target = $region17
    $region16: #{tpu_custom_call.1} parent=1 // pred_region
      _
    $region17: #{tpu_custom_call.1} parent=1 // pred_fallthru
      _
    // Predicated region
    $region18: #{tpu_custom_call.1} parent=1 // pred_check
      _
    $region19: #{tpu_custom_call.1} parent=1 // pred_check_branch
      %24 = sbr.rel (0) target = $region21
    $region20: #{tpu_custom_call.1} parent=1 // pred_region
      _
    $region21: #{tpu_custom_call.1} parent=1 // pred_fallthru
      _
    // Predicated region
    $region22: #{tpu_custom_call.1} parent=1 // pred_check
      _
    $region23: #{tpu_custom_call.1} parent=1 // pred_check_branch
      %26 = sbr.rel (0) target = $region25
    $region24: #{tpu_custom_call.1} parent=1 // pred_region
      _
    $region25: #{tpu_custom_call.1} parent=1 // pred_fallthru
      _
    // Predicated region
    $region26: #{tpu_custom_call.1} parent=1 // pred_check
      _
    $region27: #{tpu_custom_call.1} parent=1 // pred_check_branch
      %28 = sbr.rel (0) target = $region29
    $region28: #{tpu_custom_call.1} parent=1 // pred_region
      _
    $region29: #{tpu_custom_call.1} parent=1 // pred_fallthru
      _
    // Predicated region
    $region30: #{tpu_custom_call.1} parent=1 // pred_check
      _
    $region31: #{tpu_custom_call.1} parent=1 // pred_check_branch
      %30 = sbr.rel (0) target = $region33
    $region32: #{tpu_custom_call.1} parent=1 // pred_region
      _
    $region33: #{tpu_custom_call.1} parent=1 // pred_fallthru
      _
    // Predicated region
    $region34: #{tpu_custom_call.1} parent=1 // pred_check
      _
    $region35: #{tpu_custom_call.1} parent=1 // pred_check_branch
      %32 = sbr.rel (0) target = $region37
    $region36: #{tpu_custom_call.1} parent=1 // pred_region
      _
    $region37: #{tpu_custom_call.1} parent=1 // pred_fallthru
      _
    %v33 = vld [vmem:[%s6] sm:$0xff]
    %v34 = vld [vmem:[%s6 + $0x8] sm:$0xff]
    %v35 = vld [vmem:[%s6 + $0x10] sm:$0xff]
    %v36 = vld [vmem:[%s6 + $0x18] sm:$0xff]
    %v37 = vld [vmem:[%s7] sm:$0xff]
    %v38 = vld [vmem:[%s7 + $0x8] sm:$0xff]
    %v39 = vld [vmem:[%s7 + $0x10] sm:$0xff]
    %v40 = vld [vmem:[%s7 + $0x18] sm:$0xff]
    %v41 = vld [vmem:[%s8] sm:$0x1]
    %v42 = vld [vmem:[%s1] sm:$0xff]
    %v43 = vld [vmem:[%s1 + $0x8] sm:$0xff]
    %v44 = vld [vmem:[%s2] sm:$0xff]
    %v45 = vld [vmem:[%s2 + $0x8] sm:$0xff]
    %v46 = vld [vmem:[%s2 + $0x10] sm:$0xff]
    %v47 = vld [vmem:[%s2 + $0x18] sm:$0xff]
    %v48 = vld [vmem:[%s3] sm:$0x1]
    %v49 = vld [vmem:[%s4] sm:$0xff]
    %v50 = vld [vmem:[%s4 + $0x8] sm:$0xff]
    %v51 = vld [vmem:[%s4 + $0x10] sm:$0xff]
    %v52 = vld [vmem:[%s4 + $0x18] sm:$0xff]
    %v53 = vld [vmem:[%s4 + $0x20] sm:$0xff]
    %v54 = vld [vmem:[%s4 + $0x28] sm:$0xff]
    %v55 = vld [vmem:[%s4 + $0x30] sm:$0xff]
    %v56 = vld [vmem:[%s4 + $0x38] sm:$0xff]
    %v57 = vld [vmem:[%s5] sm:$0x1]
    %v59 = vlaneseq
    %v60 = vshrl.u32 %v59, 7
    %v61 = vsub.s32 0, %v60
    %v62 = vrot.slane %v57, %v61
    %v64 = vld [vmem:[%s0] sm:$0xff]
    %v65 = vld [vmem:[%s0 + $0x8] sm:$0xff]
    %v66 = vld [vmem:[%s0 + $0x10] sm:$0xff]
    %v67 = vld [vmem:[%s0 + $0x18] sm:$0xff]
    %v69 = vlaneseq
    %v70 = vshrl.u32 %v69, 7
    %v71 = vsub.s32 0, %v70
    %v72 = vrot.slane %v48, %v71
    %vm74 = vcmask 130048
    %v76 = vsel %vm74, %v64, 0
    %v79 = vsel %vm74, %v65, 0
    %v82 = vsel %vm74, %v66, 0
    %v85 = vsel %vm74, %v67, 0
    %87 = vmatprep.subr.mxu0 0.0
    %88 = vmatpush1.msra.mxu0 %v42
    %89 = vmatprep.subr.mxu0 0.0
    %90 = vmatpush1.msra.mxu0 %v43
    %91 = vmatprep.subr.mxu0 0.0
    %92 = vmatpush1.msra.mxu0 0.0
    %93 = vmatprep.subr.mxu0 0.0
    %94 = vmatpush1.msra.mxu0 0.0
    %95 = vmatprep.subr.mxu0 0.0
    %96 = vmatpush1.msra.mxu0 0.0
    %97 = vmatprep.subr.mxu0 0.0
    %98 = vmatpush1.msra.mxu0 0.0
    %99 = vmatprep.subr.mxu0 0.0
    %100 = vmatpush1.msra.mxu0 0.0
    %101 = vmatprep.subr.mxu0 0.0
    %102 = vmatpush1.msra.mxu0 0.0
    %103 = vmatprep.subr.mxu0 0.0
    %104 = vmatpush1.msra.mxu0 0.0
    %105 = vmatprep.subr.mxu0 0.0
    %106 = vmatpush1.msra.mxu0 0.0
    %107 = vmatprep.subr.mxu0 0.0
    %108 = vmatpush1.msra.mxu0 0.0
    %109 = vmatprep.subr.mxu0 0.0
    %110 = vmatpush1.msra.mxu0 0.0
    %111 = vmatprep.subr.mxu0 0.0
    %112 = vmatpush1.msra.mxu0 0.0
    %113 = vmatprep.subr.mxu0 0.0
    %114 = vmatpush1.msra.mxu0 0.0
    %115 = vmatprep.subr.mxu0 0.0
    %116 = vmatpush1.msra.mxu0 0.0
    %117 = vmatprep.subr.mxu0 0.0
    %118 = vmatpush1.msra.mxu0 0.0
    %119 = vmatprep.subr.mxu0 0.0
    %120 = vmatpush1.msra.mxu0 0.0
    %121 = vmatprep.subr.mxu0 0.0
    %122 = vmatpush1.msra.mxu0 0.0
    %123 = vmatprep.subr.mxu0 0.0
    %124 = vmatpush1.msra.mxu0 0.0
    %125 = vmatprep.subr.mxu0 0.0
    %126 = vmatpush1.msra.mxu0 0.0
    %127 = vmatprep.subr.mxu0 0.0
    %128 = vmatpush1.msra.mxu0 0.0
    %129 = vmatprep.subr.mxu0 0.0
    %130 = vmatpush1.msra.mxu0 0.0
    %131 = vmatprep.subr.mxu0 0.0
    %132 = vmatpush1.msra.mxu0 0.0
    %133 = vmatprep.subr.mxu0 0.0
    %134 = vmatpush1.msra.mxu0 0.0
    %135 = vmatprep.subr.mxu0 0.0
    %136 = vmatpush1.msra.mxu0 0.0
    %137 = vmatprep.subr.mxu0 0.0
    %138 = vmatpush1.msra.mxu0 0.0
    %139 = vmatprep.subr.mxu0 0.0
    %140 = vmatpush1.msra.mxu0 0.0
    %141 = vmatprep.subr.mxu0 0.0
    %142 = vmatpush1.msra.mxu0 0.0
    %143 = vmatprep.subr.mxu0 0.0
    %144 = vmatpush1.msra.mxu0 0.0
    %145 = vmatprep.subr.mxu0 0.0
    %146 = vmatpush1.msra.mxu0 0.0
    %147 = vmatprep.subr.mxu0 0.0
    %148 = vmatpush1.msra.mxu0 0.0
    %149 = vmatprep.subr.mxu0 0.0
    %150 = vmatpush1.msra.mxu0 0.0
    %151 = vmatprep.mubr.f32.mxu0 0.0
    %152 = vmatmul.mubr.f32.gmra.mrb[0].mxu0 %v76
    %v153 = vpop.f32.mrb[0].mxu0
    %v154 = vadd.f32 %v72, %v153
    %v155 = vpop.f32.mrb[0].mxu0
    %156 = vmatprep.mubr.f32.mxu0 0.0
    %157 = vmatmul.mubr.f32.gmra.mrb[0].mxu0 %v79
    %v158 = vpop.f32.mrb[0].mxu0
    %v159 = vadd.f32 %v72, %v158
    %v160 = vpop.f32.mrb[0].mxu0
    %161 = vmatprep.mubr.f32.mxu0 0.0
    %162 = vmatmul.mubr.f32.gmra.mrb[0].mxu0 %v82
    %v163 = vpop.f32.mrb[0].mxu0
    %v164 = vadd.f32 %v72, %v163
    %v165 = vpop.f32.mrb[0].mxu0
    %166 = vmatprep.mubr.f32.mxu0 0.0
    %167 = vmatmul.mubr.f32.gmra.mrb[0].mxu0 %v85
    %v168 = vpop.f32.mrb[0].mxu0
    %v169 = vadd.f32 %v72, %v168
    %v170 = vpop.f32.mrb[0].mxu0
    %171 = vdwg.mxu0
    %v172 = vxor.u32 %v169, 2147483648
    %v173 = vmul.f32 %v172, 1.442695
    %v174 = vpow.pop %v173
    %v175 = vadd.f32 %v174, 1.0
    %v176 = vrcp.pop %v175
    %v177 = vmul.f32 1.0, %v176
    %v178 = vtanh.pop %v169
    %180 = vrot.lane.b32.xlu0 %v178, 64
    %v181 = vpop.permute.xlu0 %180
    %v183 = vmul.f32 %v177, %v181
    %v184 = vtanh.pop %v183
    %186 = vrot.lane.b32.xlu0 %v184, 96
    %v187 = vpop.permute.xlu0 %186
    %v189 = vmul.f32 %v177, %v187
    %v191 = vrot.slane %v189, 4
    %192 = vrot.lane.b32.xlu0 %v191, 32
    %v193 = vpop.permute.xlu0 %192
    %vm194 = vcmask 261120
    %v195 = vsel %vm194, %v193, 0
    %197 = vmatprep.subr.mxu0 0.0
    %198 = vmatpush1.msra.mxu0 %v49
    %199 = vmatprep.subr.mxu0 0.0
    %200 = vmatpush1.msra.mxu0 %v50
    %201 = vmatprep.subr.mxu0 0.0
    %202 = vmatpush1.msra.mxu0 %v51
    %203 = vmatprep.subr.mxu0 0.0
    %204 = vmatpush1.msra.mxu0 %v52
    %205 = vmatprep.subr.mxu0 0.0
    %206 = vmatpush1.msra.mxu0 0.0
    %207 = vmatprep.subr.mxu0 0.0
    %208 = vmatpush1.msra.mxu0 0.0
    %209 = vmatprep.subr.mxu0 0.0
    %210 = vmatpush1.msra.mxu0 0.0
    %211 = vmatprep.subr.mxu0 0.0
    %212 = vmatpush1.msra.mxu0 0.0
    %213 = vmatprep.subr.mxu0 0.0
    %214 = vmatpush1.msra.mxu0 0.0
    %215 = vmatprep.subr.mxu0 0.0
    %216 = vmatpush1.msra.mxu0 0.0
    %217 = vmatprep.subr.mxu0 0.0
    %218 = vmatpush1.msra.mxu0 0.0
    %219 = vmatprep.subr.mxu0 0.0
    %220 = vmatpush1.msra.mxu0 0.0
    %221 = vmatprep.subr.mxu0 0.0
    %222 = vmatpush1.msra.mxu0 0.0
    %223 = vmatprep.subr.mxu0 0.0
    %224 = vmatpush1.msra.mxu0 0.0
    %225 = vmatprep.subr.mxu0 0.0
    %226 = vmatpush1.msra.mxu0 0.0
    %227 = vmatprep.subr.mxu0 0.0
    %228 = vmatpush1.msra.mxu0 0.0
    %229 = vmatprep.subr.mxu0 0.0
    %230 = vmatpush1.msra.mxu0 0.0
    %231 = vmatprep.subr.mxu0 0.0
    %232 = vmatpush1.msra.mxu0 0.0
    %233 = vmatprep.subr.mxu0 0.0
    %234 = vmatpush1.msra.mxu0 0.0
    %235 = vmatprep.subr.mxu0 0.0
    %236 = vmatpush1.msra.mxu0 0.0
    %237 = vmatprep.subr.mxu0 0.0
    %238 = vmatpush1.msra.mxu0 0.0
    %239 = vmatprep.subr.mxu0 0.0
    %240 = vmatpush1.msra.mxu0 0.0
    %241 = vmatprep.subr.mxu0 0.0
    %242 = vmatpush1.msra.mxu0 0.0
    %243 = vmatprep.subr.mxu0 0.0
    %244 = vmatpush1.msra.mxu0 0.0
    %245 = vmatprep.subr.mxu0 0.0
    %246 = vmatpush1.msra.mxu0 0.0
    %247 = vmatprep.subr.mxu0 0.0
    %248 = vmatpush1.msra.mxu0 0.0
    %249 = vmatprep.subr.mxu0 0.0
    %250 = vmatpush1.msra.mxu0 0.0
    %251 = vmatprep.subr.mxu0 0.0
    %252 = vmatpush1.msra.mxu0 0.0
    %253 = vmatprep.subr.mxu0 0.0
    %254 = vmatpush1.msra.mxu0 0.0
    %255 = vmatprep.subr.mxu0 0.0
    %256 = vmatpush1.msra.mxu0 0.0
    %257 = vmatprep.subr.mxu0 0.0
    %258 = vmatpush1.msra.mxu0 0.0
    %259 = vmatprep.subr.mxu0 0.0
    %260 = vmatpush1.msra.mxu0 0.0
    %261 = vmatprep.mubr.f32.mxu0 0.0
    %262 = vmatmul.mubr.f32.gmra.mrb[0].mxu0 %v195
    %v263 = vpop.f32.mrb[0].mxu0
    %v264 = vadd.f32 %v62, %v263
    %v265 = vpop.f32.mrb[0].mxu0
    %266 = vdwg.mxu0
    %v267 = vxor.u32 %v264, 2147483648
    %v268 = vmul.f32 %v267, 1.442695
    %v269 = vpow.pop %v268
    %v270 = vadd.f32 %v269, 1.0
    %v271 = vrcp.pop %v270
    %v272 = vmul.f32 1.0, %v271
    %v273 = vtanh.pop %v264
    %275 = vrot.lane.b32.xlu0 %v273, 64
    %v276 = vpop.permute.xlu0 %275
    %v278 = vmul.f32 %v272, %v276
    %v279 = vtanh.pop %v278
    %281 = vrot.lane.b32.xlu0 %v279, 96
    %v282 = vpop.permute.xlu0 %281
    %v284 = vmul.f32 %v272, %v282
    %v286 = vsel %vm194, 0.0, 0
    %288 = vmatprep.subr.mxu0 0.0
    %289 = vmatpush1.msra.mxu0 %v44
    %290 = vmatprep.subr.mxu0 0.0
    %291 = vmatpush1.msra.mxu0 %v45
    %292 = vmatprep.subr.mxu0 0.0
    %293 = vmatpush1.msra.mxu0 %v46
    %294 = vmatprep.subr.mxu0 0.0
    %295 = vmatpush1.msra.mxu0 %v47
    %296 = vmatprep.subr.mxu0 0.0
    %297 = vmatpush1.msra.mxu0 0.0
    %298 = vmatprep.subr.mxu0 0.0
    %299 = vmatpush1.msra.mxu0 0.0
    %300 = vmatprep.subr.mxu0 0.0
    %301 = vmatpush1.msra.mxu0 0.0
    %302 = vmatprep.subr.mxu0 0.0
    %303 = vmatpush1.msra.mxu0 0.0
    %304 = vmatprep.subr.mxu0 0.0
    %305 = vmatpush1.msra.mxu0 0.0
    %306 = vmatprep.subr.mxu0 0.0
    %307 = vmatpush1.msra.mxu0 0.0
    %308 = vmatprep.subr.mxu0 0.0
    %309 = vmatpush1.msra.mxu0 0.0
    %310 = vmatprep.subr.mxu0 0.0
    %311 = vmatpush1.msra.mxu0 0.0
    %312 = vmatprep.subr.mxu0 0.0
    %313 = vmatpush1.msra.mxu0 0.0
    %314 = vmatprep.subr.mxu0 0.0
    %315 = vmatpush1.msra.mxu0 0.0
    %316 = vmatprep.subr.mxu0 0.0
    %317 = vmatpush1.msra.mxu0 0.0
    %318 = vmatprep.subr.mxu0 0.0
    %319 = vmatpush1.msra.mxu0 0.0
    %320 = vmatprep.subr.mxu0 0.0
    %321 = vmatpush1.msra.mxu0 0.0
    %322 = vmatprep.subr.mxu0 0.0
    %323 = vmatpush1.msra.mxu0 0.0
    %324 = vmatprep.subr.mxu0 0.0
    %325 = vmatpush1.msra.mxu0 0.0
    %326 = vmatprep.subr.mxu0 0.0
    %327 = vmatpush1.msra.mxu0 0.0
    %328 = vmatprep.subr.mxu0 0.0
    %329 = vmatpush1.msra.mxu0 0.0
    %330 = vmatprep.subr.mxu0 0.0
    %331 = vmatpush1.msra.mxu0 0.0
    %332 = vmatprep.subr.mxu0 0.0
    %333 = vmatpush1.msra.mxu0 0.0
    %334 = vmatprep.subr.mxu0 0.0
    %335 = vmatpush1.msra.mxu0 0.0
    %336 = vmatprep.subr.mxu0 0.0
    %337 = vmatpush1.msra.mxu0 0.0
    %338 = vmatprep.subr.mxu0 0.0
    %339 = vmatpush1.msra.mxu0 0.0
    %340 = vmatprep.subr.mxu0 0.0
    %341 = vmatpush1.msra.mxu0 0.0
    %342 = vmatprep.subr.mxu0 0.0
    %343 = vmatpush1.msra.mxu0 0.0
    %344 = vmatprep.subr.mxu0 0.0
    %345 = vmatpush1.msra.mxu0 0.0
    %346 = vmatprep.subr.mxu0 0.0
    %347 = vmatpush1.msra.mxu0 0.0
    %348 = vmatprep.subr.mxu0 0.0
    %349 = vmatpush1.msra.mxu0 0.0
    %350 = vmatprep.subr.mxu0 0.0
    %351 = vmatpush1.msra.mxu0 0.0
    %352 = vmatprep.mubr.f32.mxu0 0.0
    %353 = vmatmul.mubr.f32.gmra.mrb[0].mxu0 %v286
    %v354 = vpop.f32.mrb[0].mxu0
    %v355 = vadd.f32 0.0, %v354
    %v356 = vpop.f32.mrb[0].mxu0
    %357 = vdwg.mxu0
    %v358 = vadd.f32 %v154, %v355
    %v359 = vxor.u32 %v358, 2147483648
    %v360 = vmul.f32 %v359, 1.442695
    %v361 = vpow.pop %v360
    %v362 = vadd.f32 %v361, 1.0
    %v363 = vrcp.pop %v362
    %v364 = vmul.f32 1.0, %v363
    %v365 = vtanh.pop %v358
    %v366 = vmul.f32 %v364, 0.0
    %368 = vrot.lane.b32.xlu0 %v365, 64
    %v369 = vpop.permute.xlu0 %368
    %v371 = vmul.f32 %v364, %v369
    %373 = vrot.lane.b32.xlu0 %v371, 32
    %v374 = vpop.permute.xlu0 %373
    %v376 = vadd.f32 %v366, %v374
    %v377 = vtanh.pop %v376
    %379 = vrot.lane.b32.xlu0 %v377, 64
    %v380 = vpop.permute.xlu0 %379
    %v382 = vmul.f32 %v364, %v380
    %384 = vrot.lane.b32.xlu0 %v382, 32
    %v385 = vpop.permute.xlu0 %384
    %v387 = vsel %vm194, %v385, 0.0
    %vm388 = vcmask 523264
    %v390 = vsel %vm388, %v387, 0
    %392 = vmatprep.subr.mxu0 0.0
    %393 = vmatpush1.msra.mxu0 %v49
    %394 = vmatprep.subr.mxu0 0.0
    %395 = vmatpush1.msra.mxu0 %v50
    %396 = vmatprep.subr.mxu0 0.0
    %397 = vmatpush1.msra.mxu0 %v51
    %398 = vmatprep.subr.mxu0 0.0
    %399 = vmatpush1.msra.mxu0 %v52
    %400 = vmatprep.subr.mxu0 0.0
    %401 = vmatpush1.msra.mxu0 %v53
    %402 = vmatprep.subr.mxu0 0.0
    %403 = vmatpush1.msra.mxu0 %v54
    %404 = vmatprep.subr.mxu0 0.0
    %405 = vmatpush1.msra.mxu0 %v55
    %406 = vmatprep.subr.mxu0 0.0
    %407 = vmatpush1.msra.mxu0 %v56
    %408 = vmatprep.subr.mxu0 0.0
    %409 = vmatpush1.msra.mxu0 0.0
    %410 = vmatprep.subr.mxu0 0.0
    %411 = vmatpush1.msra.mxu0 0.0
    %412 = vmatprep.subr.mxu0 0.0
    %413 = vmatpush1.msra.mxu0 0.0
    %414 = vmatprep.subr.mxu0 0.0
    %415 = vmatpush1.msra.mxu0 0.0
    %416 = vmatprep.subr.mxu0 0.0
    %417 = vmatpush1.msra.mxu0 0.0
    %418 = vmatprep.subr.mxu0 0.0
    %419 = vmatpush1.msra.mxu0 0.0
    %420 = vmatprep.subr.mxu0 0.0
    %421 = vmatpush1.msra.mxu0 0.0
    %422 = vmatprep.subr.mxu0 0.0
    %423 = vmatpush1.msra.mxu0 0.0
    %424 = vmatprep.subr.mxu0 0.0
    %425 = vmatpush1.msra.mxu0 0.0
    %426 = vmatprep.subr.mxu0 0.0
    %427 = vmatpush1.msra.mxu0 0.0
    %428 = vmatprep.subr.mxu0 0.0
    %429 = vmatpush1.msra.mxu0 0.0
    %430 = vmatprep.subr.mxu0 0.0
    %431 = vmatpush1.msra.mxu0 0.0
    %432 = vmatprep.subr.mxu0 0.0
    %433 = vmatpush1.msra.mxu0 0.0
    %434 = vmatprep.subr.mxu0 0.0
    %435 = vmatpush1.msra.mxu0 0.0
    %436 = vmatprep.subr.mxu0 0.0
    %437 = vmatpush1.msra.mxu0 0.0
    %438 = vmatprep.subr.mxu0 0.0
    %439 = vmatpush1.msra.mxu0 0.0
    %440 = vmatprep.subr.mxu0 0.0
    %441 = vmatpush1.msra.mxu0 0.0
    %442 = vmatprep.subr.mxu0 0.0
    %443 = vmatpush1.msra.mxu0 0.0
    %444 = vmatprep.subr.mxu0 0.0
    %445 = vmatpush1.msra.mxu0 0.0
    %446 = vmatprep.subr.mxu0 0.0
    %447 = vmatpush1.msra.mxu0 0.0
    %448 = vmatprep.subr.mxu0 0.0
    %449 = vmatpush1.msra.mxu0 0.0
    %450 = vmatprep.subr.mxu0 0.0
    %451 = vmatpush1.msra.mxu0 0.0
    %452 = vmatprep.subr.mxu0 0.0
    %453 = vmatpush1.msra.mxu0 0.0
    %454 = vmatprep.subr.mxu0 0.0
    %455 = vmatpush1.msra.mxu0 0.0
    %456 = vmatprep.mubr.f32.mxu0 0.0
    %457 = vmatmul.mubr.f32.gmra.mrb[0].mxu0 %v390
    %v458 = vpop.f32.mrb[0].mxu0
    %v459 = vadd.f32 %v62, %v458
    %v460 = vpop.f32.mrb[0].mxu0
    %461 = vdwg.mxu0
    %v462 = vxor.u32 %v459, 2147483648
    %v463 = vmul.f32 %v462, 1.442695
    %v464 = vpow.pop %v463
    %v465 = vadd.f32 %v464, 1.0
    %v466 = vrcp.pop %v465
    %v467 = vmul.f32 1.0, %v466
    %v468 = vtanh.pop %v459
    %v469 = vmul.f32 %v467, 0.0
    %471 = vrot.lane.b32.xlu0 %v468, 64
    %v472 = vpop.permute.xlu0 %471
    %v474 = vmul.f32 %v467, %v472
    %476 = vrot.lane.b32.xlu0 %v474, 32
    %v477 = vpop.permute.xlu0 %476
    %v479 = vadd.f32 %v469, %v477
    %v480 = vtanh.pop %v479
    %482 = vrot.lane.b32.xlu0 %v480, 64
    %v483 = vpop.permute.xlu0 %482
    %v485 = vmul.f32 %v467, %v483
    %v486 = vsel %vm194, %v385, 0
    %488 = vmatprep.subr.mxu0 0.0
    %489 = vmatpush1.msra.mxu0 %v44
    %490 = vmatprep.subr.mxu0 0.0
    %491 = vmatpush1.msra.mxu0 %v45
    %492 = vmatprep.subr.mxu0 0.0
    %493 = vmatpush1.msra.mxu0 %v46
    %494 = vmatprep.subr.mxu0 0.0
    %495 = vmatpush1.msra.mxu0 %v47
    %496 = vmatprep.subr.mxu0 0.0
    %497 = vmatpush1.msra.mxu0 0.0
    %498 = vmatprep.subr.mxu0 0.0
    %499 = vmatpush1.msra.mxu0 0.0
    %500 = vmatprep.subr.mxu0 0.0
    %501 = vmatpush1.msra.mxu0 0.0
    %502 = vmatprep.subr.mxu0 0.0
    %503 = vmatpush1.msra.mxu0 0.0
    %504 = vmatprep.subr.mxu0 0.0
    %505 = vmatpush1.msra.mxu0 0.0
    %506 = vmatprep.subr.mxu0 0.0
    %507 = vmatpush1.msra.mxu0 0.0
    %508 = vmatprep.subr.mxu0 0.0
    %509 = vmatpush1.msra.mxu0 0.0
    %510 = vmatprep.subr.mxu0 0.0
    %511 = vmatpush1.msra.mxu0 0.0
    %512 = vmatprep.subr.mxu0 0.0
    %513 = vmatpush1.msra.mxu0 0.0
    %514 = vmatprep.subr.mxu0 0.0
    %515 = vmatpush1.msra.mxu0 0.0
    %516 = vmatprep.subr.mxu0 0.0
    %517 = vmatpush1.msra.mxu0 0.0
    %518 = vmatprep.subr.mxu0 0.0
    %519 = vmatpush1.msra.mxu0 0.0
    %520 = vmatprep.subr.mxu0 0.0
    %521 = vmatpush1.msra.mxu0 0.0
    %522 = vmatprep.subr.mxu0 0.0
    %523 = vmatpush1.msra.mxu0 0.0
    %524 = vmatprep.subr.mxu0 0.0
    %525 = vmatpush1.msra.mxu0 0.0
    %526 = vmatprep.subr.mxu0 0.0
    %527 = vmatpush1.msra.mxu0 0.0
    %528 = vmatprep.subr.mxu0 0.0
    %529 = vmatpush1.msra.mxu0 0.0
    %530 = vmatprep.subr.mxu0 0.0
    %531 = vmatpush1.msra.mxu0 0.0
    %532 = vmatprep.subr.mxu0 0.0
    %533 = vmatpush1.msra.mxu0 0.0
    %534 = vmatprep.subr.mxu0 0.0
    %535 = vmatpush1.msra.mxu0 0.0
    %536 = vmatprep.subr.mxu0 0.0
    %537 = vmatpush1.msra.mxu0 0.0
    %538 = vmatprep.subr.mxu0 0.0
    %539 = vmatpush1.msra.mxu0 0.0
    %540 = vmatprep.subr.mxu0 0.0
    %541 = vmatpush1.msra.mxu0 0.0
    %542 = vmatprep.subr.mxu0 0.0
    %543 = vmatpush1.msra.mxu0 0.0
    %544 = vmatprep.subr.mxu0 0.0
    %545 = vmatpush1.msra.mxu0 0.0
    %546 = vmatprep.subr.mxu0 0.0
    %547 = vmatpush1.msra.mxu0 0.0
    %548 = vmatprep.subr.mxu0 0.0
    %549 = vmatpush1.msra.mxu0 0.0
    %550 = vmatprep.subr.mxu0 0.0
    %551 = vmatpush1.msra.mxu0 0.0
    %552 = vmatprep.mubr.f32.mxu0 0.0
    %553 = vmatmul.mubr.f32.gmra.mrb[0].mxu0 %v486
    %v554 = vpop.f32.mrb[0].mxu0
    %v555 = vadd.f32 0.0, %v554
    %v556 = vpop.f32.mrb[0].mxu0
    %557 = vdwg.mxu0
    %v559 = vrot.slane %v555, 4
    %v561 = vadd.f32 %v154, %v559
    %v562 = vxor.u32 %v561, 2147483648
    %v563 = vmul.f32 %v562, 1.442695
    %v564 = vpow.pop %v563
    %v565 = vadd.f32 %v564, 1.0
    %v566 = vrcp.pop %v565
    %v567 = vmul.f32 1.0, %v566
    %v568 = vtanh.pop %v561
    %v570 = vrot.slane %v376, 4
    %v572 = vmul.f32 %v567, %v570
    %574 = vrot.lane.b32.xlu0 %v568, 64
    %v575 = vpop.permute.xlu0 %574
    %v577 = vmul.f32 %v567, %v575
    %579 = vrot.lane.b32.xlu0 %v577, 32
    %v580 = vpop.permute.xlu0 %579
    %v582 = vadd.f32 %v572, %v580
    %v583 = vtanh.pop %v582
    %585 = vrot.lane.b32.xlu0 %v583, 64
    %v586 = vpop.permute.xlu0 %585
    %v588 = vmul.f32 %v567, %v586
    %590 = vrot.lane.b32.xlu0 %v588, 32
    %v591 = vpop.permute.xlu0 %590
    %v594 = vrot.slane %v485, 4
    %595 = vrot.lane.b32.xlu0 %v594, 64
    %v596 = vpop.permute.xlu0 %595
    %v598 = vsel %vm194, %v591, %v596
    %v600 = vrot.slane %v598, 4
    %v601 = vsel %vm388, %v600, 0
    %603 = vmatprep.subr.mxu0 0.0
    %604 = vmatpush1.msra.mxu0 %v49
    %605 = vmatprep.subr.mxu0 0.0
    %606 = vmatpush1.msra.mxu0 %v50
    %607 = vmatprep.subr.mxu0 0.0
    %608 = vmatpush1.msra.mxu0 %v51
    %609 = vmatprep.subr.mxu0 0.0
    %610 = vmatpush1.msra.mxu0 %v52
    %611 = vmatprep.subr.mxu0 0.0
    %612 = vmatpush1.msra.mxu0 %v53
    %613 = vmatprep.subr.mxu0 0.0
    %614 = vmatpush1.msra.mxu0 %v54
    %615 = vmatprep.subr.mxu0 0.0
    %616 = vmatpush1.msra.mxu0 %v55
    %617 = vmatprep.subr.mxu0 0.0
    %618 = vmatpush1.msra.mxu0 %v56
    %619 = vmatprep.subr.mxu0 0.0
    %620 = vmatpush1.msra.mxu0 0.0
    %621 = vmatprep.subr.mxu0 0.0
    %622 = vmatpush1.msra.mxu0 0.0
    %623 = vmatprep.subr.mxu0 0.0
    %624 = vmatpush1.msra.mxu0 0.0
    %625 = vmatprep.subr.mxu0 0.0
    %626 = vmatpush1.msra.mxu0 0.0
    %627 = vmatprep.subr.mxu0 0.0
    %628 = vmatpush1.msra.mxu0 0.0
    %629 = vmatprep.subr.mxu0 0.0
    %630 = vmatpush1.msra.mxu0 0.0
    %631 = vmatprep.subr.mxu0 0.0
    %632 = vmatpush1.msra.mxu0 0.0
    %633 = vmatprep.subr.mxu0 0.0
    %634 = vmatpush1.msra.mxu0 0.0
    %635 = vmatprep.subr.mxu0 0.0
    %636 = vmatpush1.msra.mxu0 0.0
    %637 = vmatprep.subr.mxu0 0.0
    %638 = vmatpush1.msra.mxu0 0.0
    %639 = vmatprep.subr.mxu0 0.0
    %640 = vmatpush1.msra.mxu0 0.0
    %641 = vmatprep.subr.mxu0 0.0
    %642 = vmatpush1.msra.mxu0 0.0
    %643 = vmatprep.subr.mxu0 0.0
    %644 = vmatpush1.msra.mxu0 0.0
    %645 = vmatprep.subr.mxu0 0.0
    %646 = vmatpush1.msra.mxu0 0.0
    %647 = vmatprep.subr.mxu0 0.0
    %648 = vmatpush1.msra.mxu0 0.0
    %649 = vmatprep.subr.mxu0 0.0
    %650 = vmatpush1.msra.mxu0 0.0
    %651 = vmatprep.subr.mxu0 0.0
    %652 = vmatpush1.msra.mxu0 0.0
    %653 = vmatprep.subr.mxu0 0.0
    %654 = vmatpush1.msra.mxu0 0.0
    %655 = vmatprep.subr.mxu0 0.0
    %656 = vmatpush1.msra.mxu0 0.0
    %657 = vmatprep.subr.mxu0 0.0
    %658 = vmatpush1.msra.mxu0 0.0
    %659 = vmatprep.subr.mxu0 0.0
    %660 = vmatpush1.msra.mxu0 0.0
    %661 = vmatprep.subr.mxu0 0.0
    %662 = vmatpush1.msra.mxu0 0.0
    %663 = vmatprep.subr.mxu0 0.0
    %664 = vmatpush1.msra.mxu0 0.0
    %665 = vmatprep.subr.mxu0 0.0
    %666 = vmatpush1.msra.mxu0 0.0
    %667 = vmatprep.mubr.f32.mxu0 0.0
    %668 = vmatmul.mubr.f32.gmra.mrb[0].mxu0 %v601
    %v669 = vpop.f32.mrb[0].mxu0
    %v670 = vadd.f32 %v62, %v669
    %v671 = vpop.f32.mrb[0].mxu0
    %672 = vdwg.mxu0
    %v673 = vxor.u32 %v670, 2147483648
    %v674 = vmul.f32 %v673, 1.442695
    %v675 = vpow.pop %v674
    %v676 = vadd.f32 %v675, 1.0
    %v677 = vrcp.pop %v676
    %v678 = vmul.f32 1.0, %v677
    %v679 = vtanh.pop %v670
    %v680 = vmul.f32 %v678, %v479
    %682 = vrot.lane.b32.xlu0 %v679, 64
    %v683 = vpop.permute.xlu0 %682
    %v685 = vmul.f32 %v678, %v683
    %687 = vrot.lane.b32.xlu0 %v685, 32
    %v688 = vpop.permute.xlu0 %687
    %v690 = vadd.f32 %v680, %v688
    %v691 = vtanh.pop %v690
    %693 = vrot.lane.b32.xlu0 %v691, 64
    %v694 = vpop.permute.xlu0 %693
    %v696 = vmul.f32 %v678, %v694
    %v697 = vrot.slane %v588, 4
    %698 = vrot.lane.b32.xlu0 %v697, 32
    %v699 = vpop.permute.xlu0 %698
    %v700 = vsel %vm194, %v699, 0
    %702 = vmatprep.subr.mxu0 0.0
    %703 = vmatpush1.msra.mxu0 %v44
    %704 = vmatprep.subr.mxu0 0.0
    %705 = vmatpush1.msra.mxu0 %v45
    %706 = vmatprep.subr.mxu0 0.0
    %707 = vmatpush1.msra.mxu0 %v46
    %708 = vmatprep.subr.mxu0 0.0
    %709 = vmatpush1.msra.mxu0 %v47
    %710 = vmatprep.subr.mxu0 0.0
    %711 = vmatpush1.msra.mxu0 0.0
    %712 = vmatprep.subr.mxu0 0.0
    %713 = vmatpush1.msra.mxu0 0.0
    %714 = vmatprep.subr.mxu0 0.0
    %715 = vmatpush1.msra.mxu0 0.0
    %716 = vmatprep.subr.mxu0 0.0
    %717 = vmatpush1.msra.mxu0 0.0
    %718 = vmatprep.subr.mxu0 0.0
    %719 = vmatpush1.msra.mxu0 0.0
    %720 = vmatprep.subr.mxu0 0.0
    %721 = vmatpush1.msra.mxu0 0.0
    %722 = vmatprep.subr.mxu0 0.0
    %723 = vmatpush1.msra.mxu0 0.0
    %724 = vmatprep.subr.mxu0 0.0
    %725 = vmatpush1.msra.mxu0 0.0
    %726 = vmatprep.subr.mxu0 0.0
    %727 = vmatpush1.msra.mxu0 0.0
    %728 = vmatprep.subr.mxu0 0.0
    %729 = vmatpush1.msra.mxu0 0.0
    %730 = vmatprep.subr.mxu0 0.0
    %731 = vmatpush1.msra.mxu0 0.0
    %732 = vmatprep.subr.mxu0 0.0
    %733 = vmatpush1.msra.mxu0 0.0
    %734 = vmatprep.subr.mxu0 0.0
    %735 = vmatpush1.msra.mxu0 0.0
    %736 = vmatprep.subr.mxu0 0.0
    %737 = vmatpush1.msra.mxu0 0.0
    %738 = vmatprep.subr.mxu0 0.0
    %739 = vmatpush1.msra.mxu0 0.0
    %740 = vmatprep.subr.mxu0 0.0
    %741 = vmatpush1.msra.mxu0 0.0
    %742 = vmatprep.subr.mxu0 0.0
    %743 = vmatpush1.msra.mxu0 0.0
    %744 = vmatprep.subr.mxu0 0.0
    %745 = vmatpush1.msra.mxu0 0.0
    %746 = vmatprep.subr.mxu0 0.0
    %747 = vmatpush1.msra.mxu0 0.0
    %748 = vmatprep.subr.mxu0 0.0
    %749 = vmatpush1.msra.mxu0 0.0
    %750 = vmatprep.subr.mxu0 0.0
    %751 = vmatpush1.msra.mxu0 0.0
    %752 = vmatprep.subr.mxu0 0.0
    %753 = vmatpush1.msra.mxu0 0.0
    %754 = vmatprep.subr.mxu0 0.0
    %755 = vmatpush1.msra.mxu0 0.0
    %756 = vmatprep.subr.mxu0 0.0
    %757 = vmatpush1.msra.mxu0 0.0
    %758 = vmatprep.subr.mxu0 0.0
    %759 = vmatpush1.msra.mxu0 0.0
    %760 = vmatprep.subr.mxu0 0.0
    %761 = vmatpush1.msra.mxu0 0.0
    %762 = vmatprep.subr.mxu0 0.0
    %763 = vmatpush1.msra.mxu0 0.0
    %764 = vmatprep.subr.mxu0 0.0
    %765 = vmatpush1.msra.mxu0 0.0
    %766 = vmatprep.mubr.f32.mxu0 0.0
    %767 = vmatmul.mubr.f32.gmra.mrb[0].mxu0 %v700
    %v768 = vpop.f32.mrb[0].mxu0
    %v769 = vadd.f32 0.0, %v768
    %v770 = vpop.f32.mrb[0].mxu0
    %771 = vdwg.mxu0
    %v772 = vadd.f32 %v159, %v769
    %v773 = vxor.u32 %v772, 2147483648
    %v774 = vmul.f32 %v773, 1.442695
    %v775 = vpow.pop %v774
    %v776 = vadd.f32 %v775, 1.0
    %v777 = vrcp.pop %v776
    %v778 = vmul.f32 1.0, %v777
    %v779 = vtanh.pop %v772
    %v781 = vrot.slane %v582, 4
    %v783 = vmul.f32 %v778, %v781
    %785 = vrot.lane.b32.xlu0 %v779, 64
    %v786 = vpop.permute.xlu0 %785
    %v788 = vmul.f32 %v778, %v786
    %790 = vrot.lane.b32.xlu0 %v788, 32
    %v791 = vpop.permute.xlu0 %790
    %v793 = vadd.f32 %v783, %v791
    %v794 = vtanh.pop %v793
    %796 = vrot.lane.b32.xlu0 %v794, 64
    %v797 = vpop.permute.xlu0 %796
    %v799 = vmul.f32 %v778, %v797
    %801 = vrot.lane.b32.xlu0 %v799, 32
    %v802 = vpop.permute.xlu0 %801
    %805 = vrot.lane.b32.xlu0 %v696, 64
    %v806 = vpop.permute.xlu0 %805
    %v808 = vsel %vm194, %v802, %v806
    %v810 = vsel %vm388, %v808, 0
    %812 = vmatprep.subr.mxu0 0.0
    %813 = vmatpush1.msra.mxu0 %v49
    %814 = vmatprep.subr.mxu0 0.0
    %815 = vmatpush1.msra.mxu0 %v50
    %816 = vmatprep.subr.mxu0 0.0
    %817 = vmatpush1.msra.mxu0 %v51
    %818 = vmatprep.subr.mxu0 0.0
    %819 = vmatpush1.msra.mxu0 %v52
    %820 = vmatprep.subr.mxu0 0.0
    %821 = vmatpush1.msra.mxu0 %v53
    %822 = vmatprep.subr.mxu0 0.0
    %823 = vmatpush1.msra.mxu0 %v54
    %824 = vmatprep.subr.mxu0 0.0
    %825 = vmatpush1.msra.mxu0 %v55
    %826 = vmatprep.subr.mxu0 0.0
    %827 = vmatpush1.msra.mxu0 %v56
    %828 = vmatprep.subr.mxu0 0.0
    %829 = vmatpush1.msra.mxu0 0.0
    %830 = vmatprep.subr.mxu0 0.0
    %831 = vmatpush1.msra.mxu0 0.0
    %832 = vmatprep.subr.mxu0 0.0
    %833 = vmatpush1.msra.mxu0 0.0
    %834 = vmatprep.subr.mxu0 0.0
    %835 = vmatpush1.msra.mxu0 0.0
    %836 = vmatprep.subr.mxu0 0.0
    %837 = vmatpush1.msra.mxu0 0.0
    %838 = vmatprep.subr.mxu0 0.0
    %839 = vmatpush1.msra.mxu0 0.0
    %840 = vmatprep.subr.mxu0 0.0
    %841 = vmatpush1.msra.mxu0 0.0
    %842 = vmatprep.subr.mxu0 0.0
    %843 = vmatpush1.msra.mxu0 0.0
    %844 = vmatprep.subr.mxu0 0.0
    %845 = vmatpush1.msra.mxu0 0.0
    %846 = vmatprep.subr.mxu0 0.0
    %847 = vmatpush1.msra.mxu0 0.0
    %848 = vmatprep.subr.mxu0 0.0
    %849 = vmatpush1.msra.mxu0 0.0
    %850 = vmatprep.subr.mxu0 0.0
    %851 = vmatpush1.msra.mxu0 0.0
    %852 = vmatprep.subr.mxu0 0.0
    %853 = vmatpush1.msra.mxu0 0.0
    %854 = vmatprep.subr.mxu0 0.0
    %855 = vmatpush1.msra.mxu0 0.0
    %856 = vmatprep.subr.mxu0 0.0
    %857 = vmatpush1.msra.mxu0 0.0
    %858 = vmatprep.subr.mxu0 0.0
    %859 = vmatpush1.msra.mxu0 0.0
    %860 = vmatprep.subr.mxu0 0.0
    %861 = vmatpush1.msra.mxu0 0.0
    %862 = vmatprep.subr.mxu0 0.0
    %863 = vmatpush1.msra.mxu0 0.0
    %864 = vmatprep.subr.mxu0 0.0
    %865 = vmatpush1.msra.mxu0 0.0
    %866 = vmatprep.subr.mxu0 0.0
    %867 = vmatpush1.msra.mxu0 0.0
    %868 = vmatprep.subr.mxu0 0.0
    %869 = vmatpush1.msra.mxu0 0.0
    %870 = vmatprep.subr.mxu0 0.0
    %871 = vmatpush1.msra.mxu0 0.0
    %872 = vmatprep.subr.mxu0 0.0
    %873 = vmatpush1.msra.mxu0 0.0
    %874 = vmatprep.subr.mxu0 0.0
    %875 = vmatpush1.msra.mxu0 0.0
    %876 = vmatprep.mubr.f32.mxu0 0.0
    %877 = vmatmul.mubr.f32.gmra.mrb[0].mxu0 %v810
    %v878 = vpop.f32.mrb[0].mxu0
    %v879 = vadd.f32 %v62, %v878
    %v880 = vpop.f32.mrb[0].mxu0
    %881 = vdwg.mxu0
    %v882 = vxor.u32 %v879, 2147483648
    %v883 = vmul.f32 %v882, 1.442695
    %v884 = vpow.pop %v883
    %v885 = vadd.f32 %v884, 1.0
    %v886 = vrcp.pop %v885
    %v887 = vmul.f32 1.0, %v886
    %v888 = vtanh.pop %v879
    %v889 = vmul.f32 %v887, %v690
    %891 = vrot.lane.b32.xlu0 %v888, 64
    %v892 = vpop.permute.xlu0 %891
    %v894 = vmul.f32 %v887, %v892
    %896 = vrot.lane.b32.xlu0 %v894, 32
    %v897 = vpop.permute.xlu0 %896
    %v899 = vadd.f32 %v889, %v897
    %v900 = vtanh.pop %v899
    %902 = vrot.lane.b32.xlu0 %v900, 64
    %v903 = vpop.permute.xlu0 %902
    %v905 = vmul.f32 %v887, %v903
    %v906 = vsel %vm194, %v802, 0
    %908 = vmatprep.subr.mxu0 0.0
    %909 = vmatpush1.msra.mxu0 %v44
    %910 = vmatprep.subr.mxu0 0.0
    %911 = vmatpush1.msra.mxu0 %v45
    %912 = vmatprep.subr.mxu0 0.0
    %913 = vmatpush1.msra.mxu0 %v46
    %914 = vmatprep.subr.mxu0 0.0
    %915 = vmatpush1.msra.mxu0 %v47
    %916 = vmatprep.subr.mxu0 0.0
    %917 = vmatpush1.msra.mxu0 0.0
    %918 = vmatprep.subr.mxu0 0.0
    %919 = vmatpush1.msra.mxu0 0.0
    %920 = vmatprep.subr.mxu0 0.0
    %921 = vmatpush1.msra.mxu0 0.0
    %922 = vmatprep.subr.mxu0 0.0
    %923 = vmatpush1.msra.mxu0 0.0
    %924 = vmatprep.subr.mxu0 0.0
    %925 = vmatpush1.msra.mxu0 0.0
    %926 = vmatprep.subr.mxu0 0.0
    %927 = vmatpush1.msra.mxu0 0.0
    %928 = vmatprep.subr.mxu0 0.0
    %929 = vmatpush1.msra.mxu0 0.0
    %930 = vmatprep.subr.mxu0 0.0
    %931 = vmatpush1.msra.mxu0 0.0
    %932 = vmatprep.subr.mxu0 0.0
    %933 = vmatpush1.msra.mxu0 0.0
    %934 = vmatprep.subr.mxu0 0.0
    %935 = vmatpush1.msra.mxu0 0.0
    %936 = vmatprep.subr.mxu0 0.0
    %937 = vmatpush1.msra.mxu0 0.0
    %938 = vmatprep.subr.mxu0 0.0
    %939 = vmatpush1.msra.mxu0 0.0
    %940 = vmatprep.subr.mxu0 0.0
    %941 = vmatpush1.msra.mxu0 0.0
    %942 = vmatprep.subr.mxu0 0.0
    %943 = vmatpush1.msra.mxu0 0.0
    %944 = vmatprep.subr.mxu0 0.0
    %945 = vmatpush1.msra.mxu0 0.0
    %946 = vmatprep.subr.mxu0 0.0
    %947 = vmatpush1.msra.mxu0 0.0
    %948 = vmatprep.subr.mxu0 0.0
    %949 = vmatpush1.msra.mxu0 0.0
    %950 = vmatprep.subr.mxu0 0.0
    %951 = vmatpush1.msra.mxu0 0.0
    %952 = vmatprep.subr.mxu0 0.0
    %953 = vmatpush1.msra.mxu0 0.0
    %954 = vmatprep.subr.mxu0 0.0
    %955 = vmatpush1.msra.mxu0 0.0
    %956 = vmatprep.subr.mxu0 0.0
    %957 = vmatpush1.msra.mxu0 0.0
    %958 = vmatprep.subr.mxu0 0.0
    %959 = vmatpush1.msra.mxu0 0.0
    %960 = vmatprep.subr.mxu0 0.0
    %961 = vmatpush1.msra.mxu0 0.0
    %962 = vmatprep.subr.mxu0 0.0
    %963 = vmatpush1.msra.mxu0 0.0
    %964 = vmatprep.subr.mxu0 0.0
    %965 = vmatpush1.msra.mxu0 0.0
    %966 = vmatprep.subr.mxu0 0.0
    %967 = vmatpush1.msra.mxu0 0.0
    %968 = vmatprep.subr.mxu0 0.0
    %969 = vmatpush1.msra.mxu0 0.0
    %970 = vmatprep.subr.mxu0 0.0
    %971 = vmatpush1.msra.mxu0 0.0
    %972 = vmatprep.mubr.f32.mxu0 0.0
    %973 = vmatmul.mubr.f32.gmra.mrb[0].mxu0 %v906
    %v974 = vpop.f32.mrb[0].mxu0
    %v975 = vadd.f32 0.0, %v974
    %v976 = vpop.f32.mrb[0].mxu0
    %977 = vdwg.mxu0
    %v979 = vrot.slane %v975, 4
    %v981 = vadd.f32 %v159, %v979
    %v982 = vxor.u32 %v981, 2147483648
    %v983 = vmul.f32 %v982, 1.442695
    %v984 = vpow.pop %v983
    %v985 = vadd.f32 %v984, 1.0
    %v986 = vrcp.pop %v985
    %v987 = vmul.f32 1.0, %v986
    %v988 = vtanh.pop %v981
    %v990 = vrot.slane %v793, 4
    %v992 = vmul.f32 %v987, %v990
    %994 = vrot.lane.b32.xlu0 %v988, 64
    %v995 = vpop.permute.xlu0 %994
    %v997 = vmul.f32 %v987, %v995
    %999 = vrot.lane.b32.xlu0 %v997, 32
    %v1000 = vpop.permute.xlu0 %999
    %v1002 = vadd.f32 %v992, %v1000
    %v1003 = vtanh.pop %v1002
    %1005 = vrot.lane.b32.xlu0 %v1003, 64
    %v1006 = vpop.permute.xlu0 %1005
    %v1008 = vmul.f32 %v987, %v1006
    %1010 = vrot.lane.b32.xlu0 %v1008, 32
    %v1011 = vpop.permute.xlu0 %1010
    %v1014 = vrot.slane %v905, 4
    %1015 = vrot.lane.b32.xlu0 %v1014, 64
    %v1016 = vpop.permute.xlu0 %1015
    %v1018 = vsel %vm194, %v1011, %v1016
    %v1020 = vrot.slane %v1018, 4
    %v1021 = vsel %vm388, %v1020, 0
    %1023 = vmatprep.subr.mxu0 0.0
    %1024 = vmatpush1.msra.mxu0 %v49
    %1025 = vmatprep.subr.mxu0 0.0
    %1026 = vmatpush1.msra.mxu0 %v50
    %1027 = vmatprep.subr.mxu0 0.0
    %1028 = vmatpush1.msra.mxu0 %v51
    %1029 = vmatprep.subr.mxu0 0.0
    %1030 = vmatpush1.msra.mxu0 %v52
    %1031 = vmatprep.subr.mxu0 0.0
    %1032 = vmatpush1.msra.mxu0 %v53
    %1033 = vmatprep.subr.mxu0 0.0
    %1034 = vmatpush1.msra.mxu0 %v54
    %1035 = vmatprep.subr.mxu0 0.0
    %1036 = vmatpush1.msra.mxu0 %v55
    %1037 = vmatprep.subr.mxu0 0.0
    %1038 = vmatpush1.msra.mxu0 %v56
    %1039 = vmatprep.subr.mxu0 0.0
    %1040 = vmatpush1.msra.mxu0 0.0
    %1041 = vmatprep.subr.mxu0 0.0
    %1042 = vmatpush1.msra.mxu0 0.0
    %1043 = vmatprep.subr.mxu0 0.0
    %1044 = vmatpush1.msra.mxu0 0.0
    %1045 = vmatprep.subr.mxu0 0.0
    %1046 = vmatpush1.msra.mxu0 0.0
    %1047 = vmatprep.subr.mxu0 0.0
    %1048 = vmatpush1.msra.mxu0 0.0
    %1049 = vmatprep.subr.mxu0 0.0
    %1050 = vmatpush1.msra.mxu0 0.0
    %1051 = vmatprep.subr.mxu0 0.0
    %1052 = vmatpush1.msra.mxu0 0.0
    %1053 = vmatprep.subr.mxu0 0.0
    %1054 = vmatpush1.msra.mxu0 0.0
    %1055 = vmatprep.subr.mxu0 0.0
    %1056 = vmatpush1.msra.mxu0 0.0
    %1057 = vmatprep.subr.mxu0 0.0
    %1058 = vmatpush1.msra.mxu0 0.0
    %1059 = vmatprep.subr.mxu0 0.0
    %1060 = vmatpush1.msra.mxu0 0.0
    %1061 = vmatprep.subr.mxu0 0.0
    %1062 = vmatpush1.msra.mxu0 0.0
    %1063 = vmatprep.subr.mxu0 0.0
    %1064 = vmatpush1.msra.mxu0 0.0
    %1065 = vmatprep.subr.mxu0 0.0
    %1066 = vmatpush1.msra.mxu0 0.0
    %1067 = vmatprep.subr.mxu0 0.0
    %1068 = vmatpush1.msra.mxu0 0.0
    %1069 = vmatprep.subr.mxu0 0.0
    %1070 = vmatpush1.msra.mxu0 0.0
    %1071 = vmatprep.subr.mxu0 0.0
    %1072 = vmatpush1.msra.mxu0 0.0
    %1073 = vmatprep.subr.mxu0 0.0
    %1074 = vmatpush1.msra.mxu0 0.0
    %1075 = vmatprep.subr.mxu0 0.0
    %1076 = vmatpush1.msra.mxu0 0.0
    %1077 = vmatprep.subr.mxu0 0.0
    %1078 = vmatpush1.msra.mxu0 0.0
    %1079 = vmatprep.subr.mxu0 0.0
    %1080 = vmatpush1.msra.mxu0 0.0
    %1081 = vmatprep.subr.mxu0 0.0
    %1082 = vmatpush1.msra.mxu0 0.0
    %1083 = vmatprep.subr.mxu0 0.0
    %1084 = vmatpush1.msra.mxu0 0.0
    %1085 = vmatprep.subr.mxu0 0.0
    %1086 = vmatpush1.msra.mxu0 0.0
    %1087 = vmatprep.mubr.f32.mxu0 0.0
    %1088 = vmatmul.mubr.f32.gmra.mrb[0].mxu0 %v1021
    %v1089 = vpop.f32.mrb[0].mxu0
    %v1090 = vadd.f32 %v62, %v1089
    %v1091 = vpop.f32.mrb[0].mxu0
    %1092 = vdwg.mxu0
    %v1093 = vxor.u32 %v1090, 2147483648
    %v1094 = vmul.f32 %v1093, 1.442695
    %v1095 = vpow.pop %v1094
    %v1096 = vadd.f32 %v1095, 1.0
    %v1097 = vrcp.pop %v1096
    %v1098 = vmul.f32 1.0, %v1097
    %v1099 = vtanh.pop %v1090
    %v1100 = vmul.f32 %v1098, %v899
    %1102 = vrot.lane.b32.xlu0 %v1099, 64
    %v1103 = vpop.permute.xlu0 %1102
    %v1105 = vmul.f32 %v1098, %v1103
    %1107 = vrot.lane.b32.xlu0 %v1105, 32
    %v1108 = vpop.permute.xlu0 %1107
    %v1110 = vadd.f32 %v1100, %v1108
    %v1111 = vtanh.pop %v1110
    %1113 = vrot.lane.b32.xlu0 %v1111, 64
    %v1114 = vpop.permute.xlu0 %1113
    %v1116 = vmul.f32 %v1098, %v1114
    %v1117 = vrot.slane %v1008, 4
    %1118 = vrot.lane.b32.xlu0 %v1117, 32
    %v1119 = vpop.permute.xlu0 %1118
    %v1120 = vsel %vm194, %v1119, 0
    %1122 = vmatprep.subr.mxu0 0.0
    %1123 = vmatpush1.msra.mxu0 %v44
    %1124 = vmatprep.subr.mxu0 0.0
    %1125 = vmatpush1.msra.mxu0 %v45
    %1126 = vmatprep.subr.mxu0 0.0
    %1127 = vmatpush1.msra.mxu0 %v46
    %1128 = vmatprep.subr.mxu0 0.0
    %1129 = vmatpush1.msra.mxu0 %v47
    %1130 = vmatprep.subr.mxu0 0.0
    %1131 = vmatpush1.msra.mxu0 0.0
    %1132 = vmatprep.subr.mxu0 0.0
    %1133 = vmatpush1.msra.mxu0 0.0
    %1134 = vmatprep.subr.mxu0 0.0
    %1135 = vmatpush1.msra.mxu0 0.0
    %1136 = vmatprep.subr.mxu0 0.0
    %1137 = vmatpush1.msra.mxu0 0.0
    %1138 = vmatprep.subr.mxu0 0.0
    %1139 = vmatpush1.msra.mxu0 0.0
    %1140 = vmatprep.subr.mxu0 0.0
    %1141 = vmatpush1.msra.mxu0 0.0
    %1142 = vmatprep.subr.mxu0 0.0
    %1143 = vmatpush1.msra.mxu0 0.0
    %1144 = vmatprep.subr.mxu0 0.0
    %1145 = vmatpush1.msra.mxu0 0.0
    %1146 = vmatprep.subr.mxu0 0.0
    %1147 = vmatpush1.msra.mxu0 0.0
    %1148 = vmatprep.subr.mxu0 0.0
    %1149 = vmatpush1.msra.mxu0 0.0
    %1150 = vmatprep.subr.mxu0 0.0
    %1151 = vmatpush1.msra.mxu0 0.0
    %1152 = vmatprep.subr.mxu0 0.0
    %1153 = vmatpush1.msra.mxu0 0.0
    %1154 = vmatprep.subr.mxu0 0.0
    %1155 = vmatpush1.msra.mxu0 0.0
    %1156 = vmatprep.subr.mxu0 0.0
    %1157 = vmatpush1.msra.mxu0 0.0
    %1158 = vmatprep.subr.mxu0 0.0
    %1159 = vmatpush1.msra.mxu0 0.0
    %1160 = vmatprep.subr.mxu0 0.0
    %1161 = vmatpush1.msra.mxu0 0.0
    %1162 = vmatprep.subr.mxu0 0.0
    %1163 = vmatpush1.msra.mxu0 0.0
    %1164 = vmatprep.subr.mxu0 0.0
    %1165 = vmatpush1.msra.mxu0 0.0
    %1166 = vmatprep.subr.mxu0 0.0
    %1167 = vmatpush1.msra.mxu0 0.0
    %1168 = vmatprep.subr.mxu0 0.0
    %1169 = vmatpush1.msra.mxu0 0.0
    %1170 = vmatprep.subr.mxu0 0.0
    %1171 = vmatpush1.msra.mxu0 0.0
    %1172 = vmatprep.subr.mxu0 0.0
    %1173 = vmatpush1.msra.mxu0 0.0
    %1174 = vmatprep.subr.mxu0 0.0
    %1175 = vmatpush1.msra.mxu0 0.0
    %1176 = vmatprep.subr.mxu0 0.0
    %1177 = vmatpush1.msra.mxu0 0.0
    %1178 = vmatprep.subr.mxu0 0.0
    %1179 = vmatpush1.msra.mxu0 0.0
    %1180 = vmatprep.subr.mxu0 0.0
    %1181 = vmatpush1.msra.mxu0 0.0
    %1182 = vmatprep.subr.mxu0 0.0
    %1183 = vmatpush1.msra.mxu0 0.0
    %1184 = vmatprep.subr.mxu0 0.0
    %1185 = vmatpush1.msra.mxu0 0.0
    %1186 = vmatprep.mubr.f32.mxu0 0.0
    %1187 = vmatmul.mubr.f32.gmra.mrb[0].mxu0 %v1120
    %v1188 = vpop.f32.mrb[0].mxu0
    %v1189 = vadd.f32 0.0, %v1188
    %v1190 = vpop.f32.mrb[0].mxu0
    %1191 = vdwg.mxu0
    %v1192 = vadd.f32 %v164, %v1189
    %v1193 = vxor.u32 %v1192, 2147483648
    %v1194 = vmul.f32 %v1193, 1.442695
    %v1195 = vpow.pop %v1194
    %v1196 = vadd.f32 %v1195, 1.0
    %v1197 = vrcp.pop %v1196
    %v1198 = vmul.f32 1.0, %v1197
    %v1199 = vtanh.pop %v1192
    %v1201 = vrot.slane %v1002, 4
    %v1203 = vmul.f32 %v1198, %v1201
    %1205 = vrot.lane.b32.xlu0 %v1199, 64
    %v1206 = vpop.permute.xlu0 %1205
    %v1208 = vmul.f32 %v1198, %v1206
    %1210 = vrot.lane.b32.xlu0 %v1208, 32
    %v1211 = vpop.permute.xlu0 %1210
    %v1213 = vadd.f32 %v1203, %v1211
    %v1214 = vtanh.pop %v1213
    %1216 = vrot.lane.b32.xlu0 %v1214, 64
    %v1217 = vpop.permute.xlu0 %1216
    %v1219 = vmul.f32 %v1198, %v1217
    %1221 = vrot.lane.b32.xlu0 %v1219, 32
    %v1222 = vpop.permute.xlu0 %1221
    %1225 = vrot.lane.b32.xlu0 %v1116, 64
    %v1226 = vpop.permute.xlu0 %1225
    %v1228 = vsel %vm194, %v1222, %v1226
    %v1230 = vsel %vm388, %v1228, 0
    %1232 = vmatprep.subr.mxu0 0.0
    %1233 = vmatpush1.msra.mxu0 %v49
    %1234 = vmatprep.subr.mxu0 0.0
    %1235 = vmatpush1.msra.mxu0 %v50
    %1236 = vmatprep.subr.mxu0 0.0
    %1237 = vmatpush1.msra.mxu0 %v51
    %1238 = vmatprep.subr.mxu0 0.0
    %1239 = vmatpush1.msra.mxu0 %v52
    %1240 = vmatprep.subr.mxu0 0.0
    %1241 = vmatpush1.msra.mxu0 %v53
    %1242 = vmatprep.subr.mxu0 0.0
    %1243 = vmatpush1.msra.mxu0 %v54
    %1244 = vmatprep.subr.mxu0 0.0
    %1245 = vmatpush1.msra.mxu0 %v55
    %1246 = vmatprep.subr.mxu0 0.0
    %1247 = vmatpush1.msra.mxu0 %v56
    %1248 = vmatprep.subr.mxu0 0.0
    %1249 = vmatpush1.msra.mxu0 0.0
    %1250 = vmatprep.subr.mxu0 0.0
    %1251 = vmatpush1.msra.mxu0 0.0
    %1252 = vmatprep.subr.mxu0 0.0
    %1253 = vmatpush1.msra.mxu0 0.0
    %1254 = vmatprep.subr.mxu0 0.0
    %1255 = vmatpush1.msra.mxu0 0.0
    %1256 = vmatprep.subr.mxu0 0.0
    %1257 = vmatpush1.msra.mxu0 0.0
    %1258 = vmatprep.subr.mxu0 0.0
    %1259 = vmatpush1.msra.mxu0 0.0
    %1260 = vmatprep.subr.mxu0 0.0
    %1261 = vmatpush1.msra.mxu0 0.0
    %1262 = vmatprep.subr.mxu0 0.0
    %1263 = vmatpush1.msra.mxu0 0.0
    %1264 = vmatprep.subr.mxu0 0.0
    %1265 = vmatpush1.msra.mxu0 0.0
    %1266 = vmatprep.subr.mxu0 0.0
    %1267 = vmatpush1.msra.mxu0 0.0
    %1268 = vmatprep.subr.mxu0 0.0
    %1269 = vmatpush1.msra.mxu0 0.0
    %1270 = vmatprep.subr.mxu0 0.0
    %1271 = vmatpush1.msra.mxu0 0.0
    %1272 = vmatprep.subr.mxu0 0.0
    %1273 = vmatpush1.msra.mxu0 0.0
    %1274 = vmatprep.subr.mxu0 0.0
    %1275 = vmatpush1.msra.mxu0 0.0
    %1276 = vmatprep.subr.mxu0 0.0
    %1277 = vmatpush1.msra.mxu0 0.0
    %1278 = vmatprep.subr.mxu0 0.0
    %1279 = vmatpush1.msra.mxu0 0.0
    %1280 = vmatprep.subr.mxu0 0.0
    %1281 = vmatpush1.msra.mxu0 0.0
    %1282 = vmatprep.subr.mxu0 0.0
    %1283 = vmatpush1.msra.mxu0 0.0
    %1284 = vmatprep.subr.mxu0 0.0
    %1285 = vmatpush1.msra.mxu0 0.0
    %1286 = vmatprep.subr.mxu0 0.0
    %1287 = vmatpush1.msra.mxu0 0.0
    %1288 = vmatprep.subr.mxu0 0.0
    %1289 = vmatpush1.msra.mxu0 0.0
    %1290 = vmatprep.subr.mxu0 0.0
    %1291 = vmatpush1.msra.mxu0 0.0
    %1292 = vmatprep.subr.mxu0 0.0
    %1293 = vmatpush1.msra.mxu0 0.0
    %1294 = vmatprep.subr.mxu0 0.0
    %1295 = vmatpush1.msra.mxu0 0.0
    %1296 = vmatprep.mubr.f32.mxu0 0.0
    %1297 = vmatmul.mubr.f32.gmra.mrb[0].mxu0 %v1230
    %v1298 = vpop.f32.mrb[0].mxu0
    %v1299 = vadd.f32 %v62, %v1298
    %v1300 = vpop.f32.mrb[0].mxu0
    %1301 = vdwg.mxu0
    %v1302 = vxor.u32 %v1299, 2147483648
    %v1303 = vmul.f32 %v1302, 1.442695
    %v1304 = vpow.pop %v1303
    %v1305 = vadd.f32 %v1304, 1.0
    %v1306 = vrcp.pop %v1305
    %v1307 = vmul.f32 1.0, %v1306
    %v1308 = vtanh.pop %v1299
    %v1309 = vmul.f32 %v1307, %v1110
    %1311 = vrot.lane.b32.xlu0 %v1308, 64
    %v1312 = vpop.permute.xlu0 %1311
    %v1314 = vmul.f32 %v1307, %v1312
    %1316 = vrot.lane.b32.xlu0 %v1314, 32
    %v1317 = vpop.permute.xlu0 %1316
    %v1319 = vadd.f32 %v1309, %v1317
    %v1320 = vtanh.pop %v1319
    %1322 = vrot.lane.b32.xlu0 %v1320, 64
    %v1323 = vpop.permute.xlu0 %1322
    %v1325 = vmul.f32 %v1307, %v1323
    %v1326 = vsel %vm194, %v1222, 0
    %1328 = vmatprep.subr.mxu0 0.0
    %1329 = vmatpush1.msra.mxu0 %v44
    %1330 = vmatprep.subr.mxu0 0.0
    %1331 = vmatpush1.msra.mxu0 %v45
    %1332 = vmatprep.subr.mxu0 0.0
    %1333 = vmatpush1.msra.mxu0 %v46
    %1334 = vmatprep.subr.mxu0 0.0
    %1335 = vmatpush1.msra.mxu0 %v47
    %1336 = vmatprep.subr.mxu0 0.0
    %1337 = vmatpush1.msra.mxu0 0.0
    %1338 = vmatprep.subr.mxu0 0.0
    %1339 = vmatpush1.msra.mxu0 0.0
    %1340 = vmatprep.subr.mxu0 0.0
    %1341 = vmatpush1.msra.mxu0 0.0
    %1342 = vmatprep.subr.mxu0 0.0
    %1343 = vmatpush1.msra.mxu0 0.0
    %1344 = vmatprep.subr.mxu0 0.0
    %1345 = vmatpush1.msra.mxu0 0.0
    %1346 = vmatprep.subr.mxu0 0.0
    %1347 = vmatpush1.msra.mxu0 0.0
    %1348 = vmatprep.subr.mxu0 0.0
    %1349 = vmatpush1.msra.mxu0 0.0
    %1350 = vmatprep.subr.mxu0 0.0
    %1351 = vmatpush1.msra.mxu0 0.0
    %1352 = vmatprep.subr.mxu0 0.0
    %1353 = vmatpush1.msra.mxu0 0.0
    %1354 = vmatprep.subr.mxu0 0.0
    %1355 = vmatpush1.msra.mxu0 0.0
    %1356 = vmatprep.subr.mxu0 0.0
    %1357 = vmatpush1.msra.mxu0 0.0
    %1358 = vmatprep.subr.mxu0 0.0
    %1359 = vmatpush1.msra.mxu0 0.0
    %1360 = vmatprep.subr.mxu0 0.0
    %1361 = vmatpush1.msra.mxu0 0.0
    %1362 = vmatprep.subr.mxu0 0.0
    %1363 = vmatpush1.msra.mxu0 0.0
    %1364 = vmatprep.subr.mxu0 0.0
    %1365 = vmatpush1.msra.mxu0 0.0
    %1366 = vmatprep.subr.mxu0 0.0
    %1367 = vmatpush1.msra.mxu0 0.0
    %1368 = vmatprep.subr.mxu0 0.0
    %1369 = vmatpush1.msra.mxu0 0.0
    %1370 = vmatprep.subr.mxu0 0.0
    %1371 = vmatpush1.msra.mxu0 0.0
    %1372 = vmatprep.subr.mxu0 0.0
    %1373 = vmatpush1.msra.mxu0 0.0
    %1374 = vmatprep.subr.mxu0 0.0
    %1375 = vmatpush1.msra.mxu0 0.0
    %1376 = vmatprep.subr.mxu0 0.0
    %1377 = vmatpush1.msra.mxu0 0.0
    %1378 = vmatprep.subr.mxu0 0.0
    %1379 = vmatpush1.msra.mxu0 0.0
    %1380 = vmatprep.subr.mxu0 0.0
    %1381 = vmatpush1.msra.mxu0 0.0
    %1382 = vmatprep.subr.mxu0 0.0
    %1383 = vmatpush1.msra.mxu0 0.0
    %1384 = vmatprep.subr.mxu0 0.0
    %1385 = vmatpush1.msra.mxu0 0.0
    %1386 = vmatprep.subr.mxu0 0.0
    %1387 = vmatpush1.msra.mxu0 0.0
    %1388 = vmatprep.subr.mxu0 0.0
    %1389 = vmatpush1.msra.mxu0 0.0
    %1390 = vmatprep.subr.mxu0 0.0
    %1391 = vmatpush1.msra.mxu0 0.0
    %1392 = vmatprep.mubr.f32.mxu0 0.0
    %1393 = vmatmul.mubr.f32.gmra.mrb[0].mxu0 %v1326
    %v1394 = vpop.f32.mrb[0].mxu0
    %v1395 = vadd.f32 0.0, %v1394
    %v1396 = vpop.f32.mrb[0].mxu0
    %1397 = vdwg.mxu0
    %v1399 = vrot.slane %v1395, 4
    %v1401 = vadd.f32 %v164, %v1399
    %v1402 = vxor.u32 %v1401, 2147483648
    %v1403 = vmul.f32 %v1402, 1.442695
    %v1404 = vpow.pop %v1403
    %v1405 = vadd.f32 %v1404, 1.0
    %v1406 = vrcp.pop %v1405
    %v1407 = vmul.f32 1.0, %v1406
    %v1408 = vtanh.pop %v1401
    %v1410 = vrot.slane %v1213, 4
    %v1412 = vmul.f32 %v1407, %v1410
    %1414 = vrot.lane.b32.xlu0 %v1408, 64
    %v1415 = vpop.permute.xlu0 %1414
    %v1417 = vmul.f32 %v1407, %v1415
    %1419 = vrot.lane.b32.xlu0 %v1417, 32
    %v1420 = vpop.permute.xlu0 %1419
    %v1422 = vadd.f32 %v1412, %v1420
    %v1423 = vtanh.pop %v1422
    %1425 = vrot.lane.b32.xlu0 %v1423, 64
    %v1426 = vpop.permute.xlu0 %1425
    %v1428 = vmul.f32 %v1407, %v1426
    %1430 = vrot.lane.b32.xlu0 %v1428, 32
    %v1431 = vpop.permute.xlu0 %1430
    %v1434 = vrot.slane %v1325, 4
    %1435 = vrot.lane.b32.xlu0 %v1434, 64
    %v1436 = vpop.permute.xlu0 %1435
    %v1438 = vsel %vm194, %v1431, %v1436
    %v1440 = vrot.slane %v1438, 4
    %v1441 = vsel %vm388, %v1440, 0
    %1443 = vmatprep.subr.mxu0 0.0
    %1444 = vmatpush1.msra.mxu0 %v49
    %1445 = vmatprep.subr.mxu0 0.0
    %1446 = vmatpush1.msra.mxu0 %v50
    %1447 = vmatprep.subr.mxu0 0.0
    %1448 = vmatpush1.msra.mxu0 %v51
    %1449 = vmatprep.subr.mxu0 0.0
    %1450 = vmatpush1.msra.mxu0 %v52
    %1451 = vmatprep.subr.mxu0 0.0
    %1452 = vmatpush1.msra.mxu0 %v53
    %1453 = vmatprep.subr.mxu0 0.0
    %1454 = vmatpush1.msra.mxu0 %v54
    %1455 = vmatprep.subr.mxu0 0.0
    %1456 = vmatpush1.msra.mxu0 %v55
    %1457 = vmatprep.subr.mxu0 0.0
    %1458 = vmatpush1.msra.mxu0 %v56
    %1459 = vmatprep.subr.mxu0 0.0
    %1460 = vmatpush1.msra.mxu0 0.0
    %1461 = vmatprep.subr.mxu0 0.0
    %1462 = vmatpush1.msra.mxu0 0.0
    %1463 = vmatprep.subr.mxu0 0.0
    %1464 = vmatpush1.msra.mxu0 0.0
    %1465 = vmatprep.subr.mxu0 0.0
    %1466 = vmatpush1.msra.mxu0 0.0
    %1467 = vmatprep.subr.mxu0 0.0
    %1468 = vmatpush1.msra.mxu0 0.0
    %1469 = vmatprep.subr.mxu0 0.0
    %1470 = vmatpush1.msra.mxu0 0.0
    %1471 = vmatprep.subr.mxu0 0.0
    %1472 = vmatpush1.msra.mxu0 0.0
    %1473 = vmatprep.subr.mxu0 0.0
    %1474 = vmatpush1.msra.mxu0 0.0
    %1475 = vmatprep.subr.mxu0 0.0
    %1476 = vmatpush1.msra.mxu0 0.0
    %1477 = vmatprep.subr.mxu0 0.0
    %1478 = vmatpush1.msra.mxu0 0.0
    %1479 = vmatprep.subr.mxu0 0.0
    %1480 = vmatpush1.msra.mxu0 0.0
    %1481 = vmatprep.subr.mxu0 0.0
    %1482 = vmatpush1.msra.mxu0 0.0
    %1483 = vmatprep.subr.mxu0 0.0
    %1484 = vmatpush1.msra.mxu0 0.0
    %1485 = vmatprep.subr.mxu0 0.0
    %1486 = vmatpush1.msra.mxu0 0.0
    %1487 = vmatprep.subr.mxu0 0.0
    %1488 = vmatpush1.msra.mxu0 0.0
    %1489 = vmatprep.subr.mxu0 0.0
    %1490 = vmatpush1.msra.mxu0 0.0
    %1491 = vmatprep.subr.mxu0 0.0
    %1492 = vmatpush1.msra.mxu0 0.0
    %1493 = vmatprep.subr.mxu0 0.0
    %1494 = vmatpush1.msra.mxu0 0.0
    %1495 = vmatprep.subr.mxu0 0.0
    %1496 = vmatpush1.msra.mxu0 0.0
    %1497 = vmatprep.subr.mxu0 0.0
    %1498 = vmatpush1.msra.mxu0 0.0
    %1499 = vmatprep.subr.mxu0 0.0
    %1500 = vmatpush1.msra.mxu0 0.0
    %1501 = vmatprep.subr.mxu0 0.0
    %1502 = vmatpush1.msra.mxu0 0.0
    %1503 = vmatprep.subr.mxu0 0.0
    %1504 = vmatpush1.msra.mxu0 0.0
    %1505 = vmatprep.subr.mxu0 0.0
    %1506 = vmatpush1.msra.mxu0 0.0
    %1507 = vmatprep.mubr.f32.mxu0 0.0
    %1508 = vmatmul.mubr.f32.gmra.mrb[0].mxu0 %v1441
    %v1509 = vpop.f32.mrb[0].mxu0
    %v1510 = vadd.f32 %v62, %v1509
    %v1511 = vpop.f32.mrb[0].mxu0
    %1512 = vdwg.mxu0
    %v1513 = vxor.u32 %v1510, 2147483648
    %v1514 = vmul.f32 %v1513, 1.442695
    %v1515 = vpow.pop %v1514
    %v1516 = vadd.f32 %v1515, 1.0
    %v1517 = vrcp.pop %v1516
    %v1518 = vmul.f32 1.0, %v1517
    %v1519 = vtanh.pop %v1510
    %v1520 = vmul.f32 %v1518, %v1319
    %1522 = vrot.lane.b32.xlu0 %v1519, 64
    %v1523 = vpop.permute.xlu0 %1522
    %v1525 = vmul.f32 %v1518, %v1523
    %1527 = vrot.lane.b32.xlu0 %v1525, 32
    %v1528 = vpop.permute.xlu0 %1527
    %v1530 = vadd.f32 %v1520, %v1528
    %v1531 = vtanh.pop %v1530
    %1533 = vrot.lane.b32.xlu0 %v1531, 64
    %v1534 = vpop.permute.xlu0 %1533
    %v1536 = vmul.f32 %v1518, %v1534
    %v1537 = vrot.slane %v1428, 4
    %1538 = vrot.lane.b32.xlu0 %v1537, 32
    %v1539 = vpop.permute.xlu0 %1538
    %v1540 = vsel %vm194, %v1539, 0
    %1542 = vmatprep.subr.mxu0 0.0
    %1543 = vmatpush1.msra.mxu0 %v44
    %1544 = vmatprep.subr.mxu0 0.0
    %1545 = vmatpush1.msra.mxu0 %v45
    %1546 = vmatprep.subr.mxu0 0.0
    %1547 = vmatpush1.msra.mxu0 %v46
    %1548 = vmatprep.subr.mxu0 0.0
    %1549 = vmatpush1.msra.mxu0 %v47
    %1550 = vmatprep.subr.mxu0 0.0
    %1551 = vmatpush1.msra.mxu0 0.0
    %1552 = vmatprep.subr.mxu0 0.0
    %1553 = vmatpush1.msra.mxu0 0.0
    %1554 = vmatprep.subr.mxu0 0.0
    %1555 = vmatpush1.msra.mxu0 0.0
    %1556 = vmatprep.subr.mxu0 0.0
    %1557 = vmatpush1.msra.mxu0 0.0
    %1558 = vmatprep.subr.mxu0 0.0
    %1559 = vmatpush1.msra.mxu0 0.0
    %1560 = vmatprep.subr.mxu0 0.0
    %1561 = vmatpush1.msra.mxu0 0.0
    %1562 = vmatprep.subr.mxu0 0.0
    %1563 = vmatpush1.msra.mxu0 0.0
    %1564 = vmatprep.subr.mxu0 0.0
    %1565 = vmatpush1.msra.mxu0 0.0
    %1566 = vmatprep.subr.mxu0 0.0
    %1567 = vmatpush1.msra.mxu0 0.0
    %1568 = vmatprep.subr.mxu0 0.0
    %1569 = vmatpush1.msra.mxu0 0.0
    %1570 = vmatprep.subr.mxu0 0.0
    %1571 = vmatpush1.msra.mxu0 0.0
    %1572 = vmatprep.subr.mxu0 0.0
    %1573 = vmatpush1.msra.mxu0 0.0
    %1574 = vmatprep.subr.mxu0 0.0
    %1575 = vmatpush1.msra.mxu0 0.0
    %1576 = vmatprep.subr.mxu0 0.0
    %1577 = vmatpush1.msra.mxu0 0.0
    %1578 = vmatprep.subr.mxu0 0.0
    %1579 = vmatpush1.msra.mxu0 0.0
    %1580 = vmatprep.subr.mxu0 0.0
    %1581 = vmatpush1.msra.mxu0 0.0
    %1582 = vmatprep.subr.mxu0 0.0
    %1583 = vmatpush1.msra.mxu0 0.0
    %1584 = vmatprep.subr.mxu0 0.0
    %1585 = vmatpush1.msra.mxu0 0.0
    %1586 = vmatprep.subr.mxu0 0.0
    %1587 = vmatpush1.msra.mxu0 0.0
    %1588 = vmatprep.subr.mxu0 0.0
    %1589 = vmatpush1.msra.mxu0 0.0
    %1590 = vmatprep.subr.mxu0 0.0
    %1591 = vmatpush1.msra.mxu0 0.0
    %1592 = vmatprep.subr.mxu0 0.0
    %1593 = vmatpush1.msra.mxu0 0.0
    %1594 = vmatprep.subr.mxu0 0.0
    %1595 = vmatpush1.msra.mxu0 0.0
    %1596 = vmatprep.subr.mxu0 0.0
    %1597 = vmatpush1.msra.mxu0 0.0
    %1598 = vmatprep.subr.mxu0 0.0
    %1599 = vmatpush1.msra.mxu0 0.0
    %1600 = vmatprep.subr.mxu0 0.0
    %1601 = vmatpush1.msra.mxu0 0.0
    %1602 = vmatprep.subr.mxu0 0.0
    %1603 = vmatpush1.msra.mxu0 0.0
    %1604 = vmatprep.subr.mxu0 0.0
    %1605 = vmatpush1.msra.mxu0 0.0
    %1606 = vmatprep.mubr.f32.mxu0 0.0
    %1607 = vmatmul.mubr.f32.gmra.mrb[0].mxu0 %v1540
    %v1608 = vpop.f32.mrb[0].mxu0
    %v1609 = vadd.f32 0.0, %v1608
    %v1610 = vpop.f32.mrb[0].mxu0
    %1611 = vdwg.mxu0
    %v1612 = vadd.f32 %v169, %v1609
    %v1613 = vxor.u32 %v1612, 2147483648
    %v1614 = vmul.f32 %v1613, 1.442695
    %v1615 = vpow.pop %v1614
    %v1616 = vadd.f32 %v1615, 1.0
    %v1617 = vrcp.pop %v1616
    %v1618 = vmul.f32 1.0, %v1617
    %v1619 = vtanh.pop %v1612
    %v1621 = vrot.slane %v1422, 4
    %v1623 = vmul.f32 %v1618, %v1621
    %1625 = vrot.lane.b32.xlu0 %v1619, 64
    %v1626 = vpop.permute.xlu0 %1625
    %v1628 = vmul.f32 %v1618, %v1626
    %1630 = vrot.lane.b32.xlu0 %v1628, 32
    %v1631 = vpop.permute.xlu0 %1630
    %v1633 = vadd.f32 %v1623, %v1631
    %v1634 = vtanh.pop %v1633
    %1636 = vrot.lane.b32.xlu0 %v1634, 64
    %v1637 = vpop.permute.xlu0 %1636
    %v1639 = vmul.f32 %v1618, %v1637
    %1641 = vrot.lane.b32.xlu0 %v1639, 32
    %v1642 = vpop.permute.xlu0 %1641
    %1645 = vrot.lane.b32.xlu0 %v1536, 64
    %v1646 = vpop.permute.xlu0 %1645
    %v1648 = vsel %vm194, %v1642, %v1646
    %v1650 = vsel %vm388, %v1648, 0
    %1652 = vmatprep.subr.mxu0 0.0
    %1653 = vmatpush1.msra.mxu0 %v49
    %1654 = vmatprep.subr.mxu0 0.0
    %1655 = vmatpush1.msra.mxu0 %v50
    %1656 = vmatprep.subr.mxu0 0.0
    %1657 = vmatpush1.msra.mxu0 %v51
    %1658 = vmatprep.subr.mxu0 0.0
    %1659 = vmatpush1.msra.mxu0 %v52
    %1660 = vmatprep.subr.mxu0 0.0
    %1661 = vmatpush1.msra.mxu0 %v53
    %1662 = vmatprep.subr.mxu0 0.0
    %1663 = vmatpush1.msra.mxu0 %v54
    %1664 = vmatprep.subr.mxu0 0.0
    %1665 = vmatpush1.msra.mxu0 %v55
    %1666 = vmatprep.subr.mxu0 0.0
    %1667 = vmatpush1.msra.mxu0 %v56
    %1668 = vmatprep.subr.mxu0 0.0
    %1669 = vmatpush1.msra.mxu0 0.0
    %1670 = vmatprep.subr.mxu0 0.0
    %1671 = vmatpush1.msra.mxu0 0.0
    %1672 = vmatprep.subr.mxu0 0.0
    %1673 = vmatpush1.msra.mxu0 0.0
    %1674 = vmatprep.subr.mxu0 0.0
    %1675 = vmatpush1.msra.mxu0 0.0
    %1676 = vmatprep.subr.mxu0 0.0
    %1677 = vmatpush1.msra.mxu0 0.0
    %1678 = vmatprep.subr.mxu0 0.0
    %1679 = vmatpush1.msra.mxu0 0.0
    %1680 = vmatprep.subr.mxu0 0.0
    %1681 = vmatpush1.msra.mxu0 0.0
    %1682 = vmatprep.subr.mxu0 0.0
    %1683 = vmatpush1.msra.mxu0 0.0
    %1684 = vmatprep.subr.mxu0 0.0
    %1685 = vmatpush1.msra.mxu0 0.0
    %1686 = vmatprep.subr.mxu0 0.0
    %1687 = vmatpush1.msra.mxu0 0.0
    %1688 = vmatprep.subr.mxu0 0.0
    %1689 = vmatpush1.msra.mxu0 0.0
    %1690 = vmatprep.subr.mxu0 0.0
    %1691 = vmatpush1.msra.mxu0 0.0
    %1692 = vmatprep.subr.mxu0 0.0
    %1693 = vmatpush1.msra.mxu0 0.0
    %1694 = vmatprep.subr.mxu0 0.0
    %1695 = vmatpush1.msra.mxu0 0.0
    %1696 = vmatprep.subr.mxu0 0.0
    %1697 = vmatpush1.msra.mxu0 0.0
    %1698 = vmatprep.subr.mxu0 0.0
    %1699 = vmatpush1.msra.mxu0 0.0
    %1700 = vmatprep.subr.mxu0 0.0
    %1701 = vmatpush1.msra.mxu0 0.0
    %1702 = vmatprep.subr.mxu0 0.0
    %1703 = vmatpush1.msra.mxu0 0.0
    %1704 = vmatprep.subr.mxu0 0.0
    %1705 = vmatpush1.msra.mxu0 0.0
    %1706 = vmatprep.subr.mxu0 0.0
    %1707 = vmatpush1.msra.mxu0 0.0
    %1708 = vmatprep.subr.mxu0 0.0
    %1709 = vmatpush1.msra.mxu0 0.0
    %1710 = vmatprep.subr.mxu0 0.0
    %1711 = vmatpush1.msra.mxu0 0.0
    %1712 = vmatprep.subr.mxu0 0.0
    %1713 = vmatpush1.msra.mxu0 0.0
    %1714 = vmatprep.subr.mxu0 0.0
    %1715 = vmatpush1.msra.mxu0 0.0
    %1716 = vmatprep.mubr.f32.mxu0 0.0
    %1717 = vmatmul.mubr.f32.gmra.mrb[0].mxu0 %v1650
    %v1718 = vpop.f32.mrb[0].mxu0
    %v1719 = vadd.f32 %v62, %v1718
    %v1720 = vpop.f32.mrb[0].mxu0
    %1721 = vdwg.mxu0
    %v1722 = vxor.u32 %v1719, 2147483648
    %v1723 = vmul.f32 %v1722, 1.442695
    %v1724 = vpow.pop %v1723
    %v1725 = vadd.f32 %v1724, 1.0
    %v1726 = vrcp.pop %v1725
    %v1727 = vmul.f32 1.0, %v1726
    %v1728 = vtanh.pop %v1719
    %v1729 = vmul.f32 %v1727, %v1530
    %1731 = vrot.lane.b32.xlu0 %v1728, 64
    %v1732 = vpop.permute.xlu0 %1731
    %v1734 = vmul.f32 %v1727, %v1732
    %1736 = vrot.lane.b32.xlu0 %v1734, 32
    %v1737 = vpop.permute.xlu0 %1736
    %v1739 = vadd.f32 %v1729, %v1737
    %v1740 = vtanh.pop %v1739
    %1742 = vrot.lane.b32.xlu0 %v1740, 64
    %v1743 = vpop.permute.xlu0 %1742
    %v1745 = vmul.f32 %v1727, %v1743
    %v1746 = vsel %vm194, %v1642, 0
    %1748 = vmatprep.subr.mxu0 0.0
    %1749 = vmatpush1.msra.mxu0 %v44
    %1750 = vmatprep.subr.mxu0 0.0
    %1751 = vmatpush1.msra.mxu0 %v45
    %1752 = vmatprep.subr.mxu0 0.0
    %1753 = vmatpush1.msra.mxu0 %v46
    %1754 = vmatprep.subr.mxu0 0.0
    %1755 = vmatpush1.msra.mxu0 %v47
    %1756 = vmatprep.subr.mxu0 0.0
    %1757 = vmatpush1.msra.mxu0 0.0
    %1758 = vmatprep.subr.mxu0 0.0
    %1759 = vmatpush1.msra.mxu0 0.0
    %1760 = vmatprep.subr.mxu0 0.0
    %1761 = vmatpush1.msra.mxu0 0.0
    %1762 = vmatprep.subr.mxu0 0.0
    %1763 = vmatpush1.msra.mxu0 0.0
    %1764 = vmatprep.subr.mxu0 0.0
    %1765 = vmatpush1.msra.mxu0 0.0
    %1766 = vmatprep.subr.mxu0 0.0
    %1767 = vmatpush1.msra.mxu0 0.0
    %1768 = vmatprep.subr.mxu0 0.0
    %1769 = vmatpush1.msra.mxu0 0.0
    %1770 = vmatprep.subr.mxu0 0.0
    %1771 = vmatpush1.msra.mxu0 0.0
    %1772 = vmatprep.subr.mxu0 0.0
    %1773 = vmatpush1.msra.mxu0 0.0
    %1774 = vmatprep.subr.mxu0 0.0
    %1775 = vmatpush1.msra.mxu0 0.0
    %1776 = vmatprep.subr.mxu0 0.0
    %1777 = vmatpush1.msra.mxu0 0.0
    %1778 = vmatprep.subr.mxu0 0.0
    %1779 = vmatpush1.msra.mxu0 0.0
    %1780 = vmatprep.subr.mxu0 0.0
    %1781 = vmatpush1.msra.mxu0 0.0
    %1782 = vmatprep.subr.mxu0 0.0
    %1783 = vmatpush1.msra.mxu0 0.0
    %1784 = vmatprep.subr.mxu0 0.0
    %1785 = vmatpush1.msra.mxu0 0.0
    %1786 = vmatprep.subr.mxu0 0.0
    %1787 = vmatpush1.msra.mxu0 0.0
    %1788 = vmatprep.subr.mxu0 0.0
    %1789 = vmatpush1.msra.mxu0 0.0
    %1790 = vmatprep.subr.mxu0 0.0
    %1791 = vmatpush1.msra.mxu0 0.0
    %1792 = vmatprep.subr.mxu0 0.0
    %1793 = vmatpush1.msra.mxu0 0.0
    %1794 = vmatprep.subr.mxu0 0.0
    %1795 = vmatpush1.msra.mxu0 0.0
    %1796 = vmatprep.subr.mxu0 0.0
    %1797 = vmatpush1.msra.mxu0 0.0
    %1798 = vmatprep.subr.mxu0 0.0
    %1799 = vmatpush1.msra.mxu0 0.0
    %1800 = vmatprep.subr.mxu0 0.0
    %1801 = vmatpush1.msra.mxu0 0.0
    %1802 = vmatprep.subr.mxu0 0.0
    %1803 = vmatpush1.msra.mxu0 0.0
    %1804 = vmatprep.subr.mxu0 0.0
    %1805 = vmatpush1.msra.mxu0 0.0
    %1806 = vmatprep.subr.mxu0 0.0
    %1807 = vmatpush1.msra.mxu0 0.0
    %1808 = vmatprep.subr.mxu0 0.0
    %1809 = vmatpush1.msra.mxu0 0.0
    %1810 = vmatprep.subr.mxu0 0.0
    %1811 = vmatpush1.msra.mxu0 0.0
    %1812 = vmatprep.mubr.f32.mxu0 0.0
    %1813 = vmatmul.mubr.f32.gmra.mrb[0].mxu0 %v1746
    %v1814 = vpop.f32.mrb[0].mxu0
    %v1815 = vadd.f32 0.0, %v1814
    %v1816 = vpop.f32.mrb[0].mxu0
    %1817 = vdwg.mxu0
    %v1819 = vrot.slane %v1815, 4
    %v1821 = vadd.f32 %v169, %v1819
    %v1822 = vxor.u32 %v1821, 2147483648
    %v1823 = vmul.f32 %v1822, 1.442695
    %v1824 = vpow.pop %v1823
    %v1825 = vadd.f32 %v1824, 1.0
    %v1826 = vrcp.pop %v1825
    %v1827 = vmul.f32 1.0, %v1826
    %v1828 = vtanh.pop %v1821
    %v1830 = vrot.slane %v1633, 4
    %v1832 = vmul.f32 %v1827, %v1830
    %1834 = vrot.lane.b32.xlu0 %v1828, 64
    %v1835 = vpop.permute.xlu0 %1834
    %v1837 = vmul.f32 %v1827, %v1835
    %1839 = vrot.lane.b32.xlu0 %v1837, 32
    %v1840 = vpop.permute.xlu0 %1839
    %v1842 = vadd.f32 %v1832, %v1840
    %v1843 = vtanh.pop %v1842
    %1845 = vrot.lane.b32.xlu0 %v1843, 64
    %v1846 = vpop.permute.xlu0 %1845
    %v1848 = vmul.f32 %v1827, %v1846
    %1850 = vrot.lane.b32.xlu0 %v1848, 32
    %v1851 = vpop.permute.xlu0 %1850
    %v1854 = vrot.slane %v1745, 4
    %1855 = vrot.lane.b32.xlu0 %v1854, 64
    %v1856 = vpop.permute.xlu0 %1855
    %v1858 = vsel %vm194, %v1851, %v1856
    %v1860 = vrot.slane %v1858, 4
    %v1861 = vsel %vm388, %v1860, 0
    %1863 = vmatprep.subr.mxu0 0.0
    %1864 = vmatpush1.msra.mxu0 %v49
    %1865 = vmatprep.subr.mxu0 0.0
    %1866 = vmatpush1.msra.mxu0 %v50
    %1867 = vmatprep.subr.mxu0 0.0
    %1868 = vmatpush1.msra.mxu0 %v51
    %1869 = vmatprep.subr.mxu0 0.0
    %1870 = vmatpush1.msra.mxu0 %v52
    %1871 = vmatprep.subr.mxu0 0.0
    %1872 = vmatpush1.msra.mxu0 %v53
    %1873 = vmatprep.subr.mxu0 0.0
    %1874 = vmatpush1.msra.mxu0 %v54
    %1875 = vmatprep.subr.mxu0 0.0
    %1876 = vmatpush1.msra.mxu0 %v55
    %1877 = vmatprep.subr.mxu0 0.0
    %1878 = vmatpush1.msra.mxu0 %v56
    %1879 = vmatprep.subr.mxu0 0.0
    %1880 = vmatpush1.msra.mxu0 0.0
    %1881 = vmatprep.subr.mxu0 0.0
    %1882 = vmatpush1.msra.mxu0 0.0
    %1883 = vmatprep.subr.mxu0 0.0
    %1884 = vmatpush1.msra.mxu0 0.0
    %1885 = vmatprep.subr.mxu0 0.0
    %1886 = vmatpush1.msra.mxu0 0.0
    %1887 = vmatprep.subr.mxu0 0.0
    %1888 = vmatpush1.msra.mxu0 0.0
    %1889 = vmatprep.subr.mxu0 0.0
    %1890 = vmatpush1.msra.mxu0 0.0
    %1891 = vmatprep.subr.mxu0 0.0
    %1892 = vmatpush1.msra.mxu0 0.0
    %1893 = vmatprep.subr.mxu0 0.0
    %1894 = vmatpush1.msra.mxu0 0.0
    %1895 = vmatprep.subr.mxu0 0.0
    %1896 = vmatpush1.msra.mxu0 0.0
    %1897 = vmatprep.subr.mxu0 0.0
    %1898 = vmatpush1.msra.mxu0 0.0
    %1899 = vmatprep.subr.mxu0 0.0
    %1900 = vmatpush1.msra.mxu0 0.0
    %1901 = vmatprep.subr.mxu0 0.0
    %1902 = vmatpush1.msra.mxu0 0.0
    %1903 = vmatprep.subr.mxu0 0.0
    %1904 = vmatpush1.msra.mxu0 0.0
    %1905 = vmatprep.subr.mxu0 0.0
    %1906 = vmatpush1.msra.mxu0 0.0
    %1907 = vmatprep.subr.mxu0 0.0
    %1908 = vmatpush1.msra.mxu0 0.0
    %1909 = vmatprep.subr.mxu0 0.0
    %1910 = vmatpush1.msra.mxu0 0.0
    %1911 = vmatprep.subr.mxu0 0.0
    %1912 = vmatpush1.msra.mxu0 0.0
    %1913 = vmatprep.subr.mxu0 0.0
    %1914 = vmatpush1.msra.mxu0 0.0
    %1915 = vmatprep.subr.mxu0 0.0
    %1916 = vmatpush1.msra.mxu0 0.0
    %1917 = vmatprep.subr.mxu0 0.0
    %1918 = vmatpush1.msra.mxu0 0.0
    %1919 = vmatprep.subr.mxu0 0.0
    %1920 = vmatpush1.msra.mxu0 0.0
    %1921 = vmatprep.subr.mxu0 0.0
    %1922 = vmatpush1.msra.mxu0 0.0
    %1923 = vmatprep.subr.mxu0 0.0
    %1924 = vmatpush1.msra.mxu0 0.0
    %1925 = vmatprep.subr.mxu0 0.0
    %1926 = vmatpush1.msra.mxu0 0.0
    %1927 = vmatprep.mubr.f32.mxu0 0.0
    %1928 = vmatmul.mubr.f32.gmra.mrb[0].mxu0 %v1861
    %v1929 = vpop.f32.mrb[0].mxu0
    %v1930 = vadd.f32 %v62, %v1929
    %v1931 = vpop.f32.mrb[0].mxu0
    %1932 = vdwg.mxu0
    %v1933 = vxor.u32 %v1930, 2147483648
    %v1934 = vmul.f32 %v1933, 1.442695
    %v1935 = vpow.pop %v1934
    %v1936 = vadd.f32 %v1935, 1.0
    %v1937 = vrcp.pop %v1936
    %v1938 = vmul.f32 1.0, %v1937
    %v1939 = vtanh.pop %v1930
    %v1940 = vmul.f32 %v1938, %v1739
    %1942 = vrot.lane.b32.xlu0 %v1939, 64
    %v1943 = vpop.permute.xlu0 %1942
    %v1945 = vmul.f32 %v1938, %v1943
    %1947 = vrot.lane.b32.xlu0 %v1945, 32
    %v1948 = vpop.permute.xlu0 %1947
    %v1950 = vadd.f32 %v1940, %v1948
    %v1951 = vtanh.pop %v1950
    %1953 = vrot.lane.b32.xlu0 %v1951, 64
    %v1954 = vpop.permute.xlu0 %1953
    %v1956 = vmul.f32 %v1938, %v1954
    %1958 = vrot.lane.b32.xlu0 %v284, 32
    %v1959 = vpop.permute.xlu0 %1958
    %v1960 = vsel %vm194, %v1959, 0
    %1962 = vmatprep.subr.mxu0 0.0
    %1963 = vmatpush1.msra.mxu0 %v37
    %1964 = vmatprep.subr.mxu0 0.0
    %1965 = vmatpush1.msra.mxu0 %v38
    %1966 = vmatprep.subr.mxu0 0.0
    %1967 = vmatpush1.msra.mxu0 %v39
    %1968 = vmatprep.subr.mxu0 0.0
    %1969 = vmatpush1.msra.mxu0 %v40
    %1970 = vmatprep.subr.mxu0 0.0
    %1971 = vmatpush1.msra.mxu0 0.0
    %1972 = vmatprep.subr.mxu0 0.0
    %1973 = vmatpush1.msra.mxu0 0.0
    %1974 = vmatprep.subr.mxu0 0.0
    %1975 = vmatpush1.msra.mxu0 0.0
    %1976 = vmatprep.subr.mxu0 0.0
    %1977 = vmatpush1.msra.mxu0 0.0
    %1978 = vmatprep.subr.mxu0 0.0
    %1979 = vmatpush1.msra.mxu0 0.0
    %1980 = vmatprep.subr.mxu0 0.0
    %1981 = vmatpush1.msra.mxu0 0.0
    %1982 = vmatprep.subr.mxu0 0.0
    %1983 = vmatpush1.msra.mxu0 0.0
    %1984 = vmatprep.subr.mxu0 0.0
    %1985 = vmatpush1.msra.mxu0 0.0
    %1986 = vmatprep.subr.mxu0 0.0
    %1987 = vmatpush1.msra.mxu0 0.0
    %1988 = vmatprep.subr.mxu0 0.0
    %1989 = vmatpush1.msra.mxu0 0.0
    %1990 = vmatprep.subr.mxu0 0.0
    %1991 = vmatpush1.msra.mxu0 0.0
    %1992 = vmatprep.subr.mxu0 0.0
    %1993 = vmatpush1.msra.mxu0 0.0
    %1994 = vmatprep.subr.mxu0 0.0
    %1995 = vmatpush1.msra.mxu0 0.0
    %1996 = vmatprep.subr.mxu0 0.0
    %1997 = vmatpush1.msra.mxu0 0.0
    %1998 = vmatprep.subr.mxu0 0.0
    %1999 = vmatpush1.msra.mxu0 0.0
    %2000 = vmatprep.subr.mxu0 0.0
    %2001 = vmatpush1.msra.mxu0 0.0
    %2002 = vmatprep.subr.mxu0 0.0
    %2003 = vmatpush1.msra.mxu0 0.0
    %2004 = vmatprep.subr.mxu0 0.0
    %2005 = vmatpush1.msra.mxu0 0.0
    %2006 = vmatprep.subr.mxu0 0.0
    %2007 = vmatpush1.msra.mxu0 0.0
    %2008 = vmatprep.subr.mxu0 0.0
    %2009 = vmatpush1.msra.mxu0 0.0
    %2010 = vmatprep.subr.mxu0 0.0
    %2011 = vmatpush1.msra.mxu0 0.0
    %2012 = vmatprep.subr.mxu0 0.0
    %2013 = vmatpush1.msra.mxu0 0.0
    %2014 = vmatprep.subr.mxu0 0.0
    %2015 = vmatpush1.msra.mxu0 0.0
    %2016 = vmatprep.subr.mxu0 0.0
    %2017 = vmatpush1.msra.mxu0 0.0
    %2018 = vmatprep.subr.mxu0 0.0
    %2019 = vmatpush1.msra.mxu0 0.0
    %2020 = vmatprep.subr.mxu0 0.0
    %2021 = vmatpush1.msra.mxu0 0.0
    %2022 = vmatprep.subr.mxu0 0.0
    %2023 = vmatpush1.msra.mxu0 0.0
    %2024 = vmatprep.subr.mxu0 0.0
    %2025 = vmatpush1.msra.mxu0 0.0
    %2026 = vmatprep.mubr.f32.mxu0 0.0
    %2027 = vmatmul.mubr.f32.gmra.mrb[0].mxu0 %v1960
    %v2028 = vpop.f32.mrb[0].mxu0
    %v2029 = vadd.f32 0.0, %v2028
    %v2030 = vpop.f32.mrb[0].mxu0
    %2031 = vdwg.mxu0
    %2033 = vrot.lane.b32.xlu0 %v1956, 32
    %v2034 = vpop.permute.xlu0 %2033
    %v2035 = vsel %vm194, %v2034, 0
    %2037 = vmatprep.subr.mxu0 0.0
    %2038 = vmatpush1.msra.mxu0 %v33
    %2039 = vmatprep.subr.mxu0 0.0
    %2040 = vmatpush1.msra.mxu0 %v34
    %2041 = vmatprep.subr.mxu0 0.0
    %2042 = vmatpush1.msra.mxu0 %v35
    %2043 = vmatprep.subr.mxu0 0.0
    %2044 = vmatpush1.msra.mxu0 %v36
    %2045 = vmatprep.subr.mxu0 0.0
    %2046 = vmatpush1.msra.mxu0 0.0
    %2047 = vmatprep.subr.mxu0 0.0
    %2048 = vmatpush1.msra.mxu0 0.0
    %2049 = vmatprep.subr.mxu0 0.0
    %2050 = vmatpush1.msra.mxu0 0.0
    %2051 = vmatprep.subr.mxu0 0.0
    %2052 = vmatpush1.msra.mxu0 0.0
    %2053 = vmatprep.subr.mxu0 0.0
    %2054 = vmatpush1.msra.mxu0 0.0
    %2055 = vmatprep.subr.mxu0 0.0
    %2056 = vmatpush1.msra.mxu0 0.0
    %2057 = vmatprep.subr.mxu0 0.0
    %2058 = vmatpush1.msra.mxu0 0.0
    %2059 = vmatprep.subr.mxu0 0.0
    %2060 = vmatpush1.msra.mxu0 0.0
    %2061 = vmatprep.subr.mxu0 0.0
    %2062 = vmatpush1.msra.mxu0 0.0
    %2063 = vmatprep.subr.mxu0 0.0
    %2064 = vmatpush1.msra.mxu0 0.0
    %2065 = vmatprep.subr.mxu0 0.0
    %2066 = vmatpush1.msra.mxu0 0.0
    %2067 = vmatprep.subr.mxu0 0.0
    %2068 = vmatpush1.msra.mxu0 0.0
    %2069 = vmatprep.subr.mxu0 0.0
    %2070 = vmatpush1.msra.mxu0 0.0
    %2071 = vmatprep.subr.mxu0 0.0
    %2072 = vmatpush1.msra.mxu0 0.0
    %2073 = vmatprep.subr.mxu0 0.0
    %2074 = vmatpush1.msra.mxu0 0.0
    %2075 = vmatprep.subr.mxu0 0.0
    %2076 = vmatpush1.msra.mxu0 0.0
    %2077 = vmatprep.subr.mxu0 0.0
    %2078 = vmatpush1.msra.mxu0 0.0
    %2079 = vmatprep.subr.mxu0 0.0
    %2080 = vmatpush1.msra.mxu0 0.0
    %2081 = vmatprep.subr.mxu0 0.0
    %2082 = vmatpush1.msra.mxu0 0.0
    %2083 = vmatprep.subr.mxu0 0.0
    %2084 = vmatpush1.msra.mxu0 0.0
    %2085 = vmatprep.subr.mxu0 0.0
    %2086 = vmatpush1.msra.mxu0 0.0
    %2087 = vmatprep.subr.mxu0 0.0
    %2088 = vmatpush1.msra.mxu0 0.0
    %2089 = vmatprep.subr.mxu0 0.0
    %2090 = vmatpush1.msra.mxu0 0.0
    %2091 = vmatprep.subr.mxu0 0.0
    %2092 = vmatpush1.msra.mxu0 0.0
    %2093 = vmatprep.subr.mxu0 0.0
    %2094 = vmatpush1.msra.mxu0 0.0
    %2095 = vmatprep.subr.mxu0 0.0
    %2096 = vmatpush1.msra.mxu0 0.0
    %2097 = vmatprep.subr.mxu0 0.0
    %2098 = vmatpush1.msra.mxu0 0.0
    %2099 = vmatprep.subr.mxu0 0.0
    %2100 = vmatpush1.msra.mxu0 0.0
    %2101 = vmatprep.mubr.f32.mxu0 0.0
    %2102 = vmatmul.mubr.f32.gmra.mrb[0].mxu0 %v2035
    %v2103 = vpop.f32.mrb[0].mxu0
    %v2104 = vadd.f32 %v2029, %v2103
    %v2105 = vpop.f32.mrb[0].mxu0
    %2106 = vdwg.mxu0
    %v2108 = vlaneseq
    %v2109 = vshrl.u32 %v2108, 7
    %v2110 = vsub.s32 0, %v2109
    %v2111 = vrot.slane %v41, %v2110
    %v2113 = vadd.f32 %v2104, %v2111
    %vm2114 = vcmask 76800
    %2115 = vst.msk [vmem:[#allocation2] sm:$0xf] %vm2114, %v2113
    // Predicated region
    $region38: #{tpu_custom_call.1} parent=1 // pred_check
      _
    $region39: #{tpu_custom_call.1} parent=1 // pred_check_branch
      %2117 = sbr.rel (0) target = $region41
    $region40: #{tpu_custom_call.1} parent=1 // pred_region
      %s2119 = ssub.s32 64, 64
      %2120 = vsyncadd [#allocation3], %s2119
      %s2122 = sshll.u32 [#allocation2], 4
      %s2123 = int_to_ptr.vmem [resolvable:$true] %s2122
      %2125 = dma.vmem_to_hbm [thread:$0]  %s2123, 64, %s9, [#allocation3]
    $region41: #{tpu_custom_call.1} parent=1 // pred_fallthru
      _
    // Predicated region
    $region42: #{tpu_custom_call.1} parent=1 // pred_check
      _
    $region43: #{tpu_custom_call.1} parent=1 // pred_check_branch
      %2127 = sbr.rel (0) target = $region45
    $region44: #{tpu_custom_call.1} parent=1 // pred_region
      %2128 = dma.done [#allocation3], 64
    $region45: #{tpu_custom_call.1} parent=1 // pred_fallthru
      _
    %2129 = vsyncpa [#allocation3], 1

</llo_original>
